<compile_context>
chip_gen: v5e
topology: v5e:2x2
jax: 0.10.0
libtpu: 0.0.40
codegen_flags: <defaults>
</compile_context>

<pallas_src>
import functools
import math

import jax
import jax.numpy as jnp
from jax.experimental import pallas as pl
from jax.experimental.pallas import tpu as pltpu

LN_EPS = 1e-5


def _round_up(a, b):
    return ((a + b - 1) // b) * b


# ----------------------------------------------------------------------------
# Kernel body: one row-tile does all three matmuls + ReLU + LayerNorm fused.
# ----------------------------------------------------------------------------
def _lid_ffn_kernel(x_ref, w1_ref, b1_ref, w2_ref, b2_ref, g_ref, beta_ref,
                    w3_ref, b3_ref, logits_ref, bneck_ref, *, inv_h):
    # Per-feature vectors are resident (constant index maps); load once per step.
    b1 = b1_ref[...]
    b2 = b2_ref[...]
    gamma = g_ref[...]
    beta = beta_ref[...]
    b3 = b3_ref[...]

    # linear_in + relu  (bf16 MXU operands, f32 accumulation). x cast in-kernel.
    x = x_ref[...].astype(jnp.bfloat16)
    h = jnp.dot(x, w1_ref[...], preferred_element_type=jnp.float32) + b1
    h = jnp.maximum(h, 0.0)

    # bottleneck_in + relu
    b = jnp.dot(h.astype(jnp.bfloat16), w2_ref[...],
                preferred_element_type=jnp.float32) + b2
    b = jnp.maximum(b, 0.0)

    # LayerNorm over the true hidden width (two-pass, f32).
    mean = jnp.sum(b, axis=-1, keepdims=True) * inv_h
    centered = b - mean
    var = jnp.sum(centered * centered, axis=-1, keepdims=True) * inv_h
    bn = centered * jax.lax.rsqrt(var + LN_EPS) * gamma + beta
    bneck_ref[...] = bn.astype(bneck_ref.dtype)

    # last_linear (logits computed from bf16-rounded bn; documented precision note)
    logits = jnp.dot(bn.astype(jnp.bfloat16), w3_ref[...],
                     preferred_element_type=jnp.float32) + b3
    logits_ref[...] = logits.astype(logits_ref.dtype)


# ----------------------------------------------------------------------------
# VMEM footprint estimate (compiler pads last dim to 128 lanes, sublanes to 8/16)
# ----------------------------------------------------------------------------
def _vmem_bytes_estimate(rt, d_in, h, d_out, weight_bufs=2):
    def tile(r, c, itemsize, sub):
        return _round_up(max(r, 1), sub) * _round_up(max(c, 1), 128) * itemsize

    weights = weight_bufs * (tile(d_in, h, 2, 16) + tile(h, h, 2, 16)
                             + tile(h, d_out, 2, 16))
    vectors = weight_bufs * (3 * tile(1, h, 4, 8) + tile(1, d_out, 4, 8))
    x_bufs = 2 * tile(rt, d_in, 4, 8)
    out_bufs = 2 * (tile(rt, d_out, 4, 8) + tile(rt, h, 4, 8))
    intermediates = 6 * tile(rt, h, 4, 8)   # h, b, bn in f32 + bf16 copies/slack
    return weights + vectors + x_bufs + out_bufs + intermediates


def _physical_vmem_bytes():
    phys = 128 * 1024 * 1024
    try:
        info = pltpu.get_tpu_info()
        v = getattr(info, "vmem_capacity_bytes", None)
        if v:
            phys = int(v)
    except Exception:
        pass
    return phys


# ----------------------------------------------------------------------------
# pallas_call builder
# ----------------------------------------------------------------------------
def _const_spec(shape, mode):
    idx = lambda i: (0,) * len(shape)
    if mode is None:
        return pl.BlockSpec(shape, idx)
    return pl.BlockSpec(shape, idx, pipeline_mode=mode)


def _build_call(kernel, M, D_in, H, D_out, rt, grid, out_dtype,
                weight_mode, vmem_limit):
    in_specs = [
        pl.BlockSpec((rt, D_in), lambda i: (i, 0)),     # x tile (f32 in HBM)
        _const_spec((D_in, H), weight_mode),            # W1 (bf16, resident)
        _const_spec((1, H), weight_mode),               # b1
        _const_spec((H, H), weight_mode),               # W2 (bf16, resident)
        _const_spec((1, H), weight_mode),               # b2
        _const_spec((1, H), weight_mode),               # ln gamma
        _const_spec((1, H), weight_mode),               # ln beta
        _const_spec((H, D_out), weight_mode),           # W3 (bf16, resident)
        _const_spec((1, D_out), weight_mode),           # b3
    ]
    out_specs = [
        pl.BlockSpec((rt, D_out), lambda i: (i, 0)),    # logits (true width)
        pl.BlockSpec((rt, H), lambda i: (i, 0)),        # bottleneck (true width)
    ]
    return pl.pallas_call(
        kernel,
        out_shape=(
            jax.ShapeDtypeStruct((M, D_out), out_dtype),
            jax.ShapeDtypeStruct((M, H), out_dtype),
        ),
        grid_spec=pltpu.PrefetchScalarGridSpec(
            num_scalar_prefetch=0,
            grid=grid,
            in_specs=in_specs,
            out_specs=out_specs,
        ),
        compiler_params=pltpu.CompilerParams(
            dimension_semantics=("parallel",),
            vmem_limit_bytes=int(vmem_limit),
        ),
    )


# ----------------------------------------------------------------------------
# One-time parameter prep (hoisted out of the per-call path).
# ----------------------------------------------------------------------------
def prepare_params(params):
    """Cast weights to bf16 and shape per-feature vectors to (1, N) once."""
    w1, b1, w2, b2, ln_g, ln_b, w3, b3 = params
    row = lambda v: jnp.asarray(v, jnp.float32).reshape(1, -1)
    return (
        jnp.asarray(w1, jnp.bfloat16), row(b1),
        jnp.asarray(w2, jnp.bfloat16), row(b2),
        row(ln_g), row(ln_b),
        jnp.asarray(w3, jnp.bfloat16), row(b3),
    )


# ----------------------------------------------------------------------------
# Forward wrapper
# ----------------------------------------------------------------------------
def lid_feedforward_small(x, prepared_params, *, row_tile=512,
                          out_dtype=jnp.float32):
    """x: [len, bsz, input_size] -> (logits [len, bsz, output_size],
                                      bottleneck [len, bsz, hidden_size])"""
    L, B, D_in = x.shape
    w1, b1, w2, b2, ln_g, ln_b, w3, b3 = prepared_params
    H = w1.shape[1]
    D_out = w3.shape[1]
    M = L * B
    x2 = x.reshape(M, D_in)

    # Row tile: large (amortizes ~0.35us/grid-step), multiple of 8, but keep
    # >=4 grid steps when M allows so v7x gets 2 pipelined steps per TensorCore.
    rt = min(row_tile, max(8, _round_up(pl.cdiv(M, 4), 8)))
    rt = _round_up(rt, 8)

    # Generation-aware VMEM budget: cap at ~85% of physical VMEM per core
    # (~54 MiB on v7x, ~108 MiB on v5e/v6e); shrink the row tile if needed.
    cap = int(_physical_vmem_bytes() * 0.85)
    while rt > 8 and _vmem_bytes_estimate(rt, D_in, H, D_out) > cap:
        rt = max(8, _round_up(rt // 2, 8))
    vmem_limit = min(cap, max(32 * 1024 * 1024,
                              _vmem_bytes_estimate(rt, D_in, H, D_out)
                              + 4 * 1024 * 1024))

    grid = (pl.cdiv(M, rt),)
    kernel = functools.partial(_lid_ffn_kernel, inv_h=1.0 / H)

    # Grid-invariant weights are fetched only once; request single buffering to
    # halve their VMEM reservation, falling back to default pipelining if this
    # JAX/Mosaic version rejects pipeline_mode / Buffered(1).
    modes = []
    try:
        modes.append(pl.Buffered(1))
    except Exception:
        pass
    modes.append(None)

    logits2 = bneck2 = None
    for idx, mode in enumerate(modes):
        try:
            call = _build_call(kernel, M, D_in, H, D_out, rt, grid,
                               out_dtype, mode, vmem_limit)
            logits2, bneck2 = call(x2, w1, b1, w2, b2, ln_g, ln_b, w3, b3)
            break
        except Exception:
            if idx == len(modes) - 1:
                raise

    logits = logits2.reshape(L, B, D_out)
    bneck = bneck2.reshape(L, B, H)
    return logits, bneck


# ----------------------------------------------------------------------------
# Deterministic init matching nn.Linear defaults / the module __init__ (f32).
# ----------------------------------------------------------------------------
def init_params(key, input_size, hidden_size, output_size):
    ks = jax.random.split(key, 6)

    def linear(kw, kb, fan_in, fan_out):
        bound = 1.0 / math.sqrt(fan_in)
        # stored transposed: [fan_in, fan_out]
        w = jax.random.uniform(kw, (fan_in, fan_out), jnp.float32, -bound, bound)
        b = jax.random.uniform(kb, (1, fan_out), jnp.float32, -bound, bound)
        return w, b

    w1, b1 = linear(ks[0], ks[1], input_size, hidden_size)
    w2, b2 = linear(ks[2], ks[3], hidden_size, hidden_size)
    # last_linear: uniform(-stdv, stdv) weights, zero bias (per module __init__)
    stdv = 1.0 / math.sqrt(hidden_size)
    w3 = jax.random.uniform(ks[4], (hidden_size, output_size), jnp.float32,
                            -stdv, stdv)
    b3 = jnp.zeros((1, output_size), jnp.float32)
    # LayerNorm affine: gamma=1, beta=0
    ln_g = jnp.ones((1, hidden_size), jnp.float32)
    ln_b = jnp.zeros((1, hidden_size), jnp.float32)
    return (w1, b1, w2, b2, ln_g, ln_b, w3, b3)


def _reference(x, params):
    """Pure-f32 reference of the module's forward pass."""
    w1, b1, w2, b2, ln_g, ln_b, w3, b3 = params
    h = jnp.maximum(x @ w1 + b1[0], 0.0)
    b = jnp.maximum(h @ w2 + b2[0], 0.0)
    mean = jnp.mean(b, axis=-1, keepdims=True)
    var = jnp.mean((b - mean) ** 2, axis=-1, keepdims=True)
    bn = (b - mean) * jax.lax.rsqrt(var + LN_EPS) * ln_g[0] + ln_b[0]
    return bn @ w3 + b3[0], bn


if __name__ == "__main__":
    # small shapes consistent with the module: [len x bsz x input_size]
    L, B = 8, 2
    input_size, hidden_size, output_size = 32, 32, 16

    key = jax.random.PRNGKey(0)
    k_x, k_p = jax.random.split(key)
    x = jax.random.normal(k_x, (L, B, input_size), jnp.float32)
    params = init_params(k_p, input_size, hidden_size, output_size)
    prepared = prepare_params(params)   # one-time weight prep (bf16 cast)

    logits, bottleneck = lid_feedforward_small(x, prepared)
    logits, bottleneck = jax.block_until_ready((logits, bottleneck))

    ref_logits, ref_bneck = _reference(x, params)
    assert logits.shape == (L, B, output_size)
    assert bottleneck.shape == (L, B, hidden_size)
    # Tolerances account for bf16 MXU operands (accumulation / LayerNorm in f32).
    assert jnp.allclose(logits, ref_logits, atol=5e-2, rtol=5e-2)
    assert jnp.allclose(bottleneck, ref_bneck, atol=5e-2, rtol=5e-2)

    print("KERNEL_OK")
</pallas_src>

<mosaic_0001>
module attributes {stable_mosaic.version = 11 : i64} {
  func.func @_lid_ffn_kernel(%arg0: i32, %arg1: memref<8x32xf32, #tpu.memory_space<vmem>>, %arg2: memref<32x32xbf16, #tpu.memory_space<vmem>>, %arg3: memref<1x32xf32, #tpu.memory_space<vmem>>, %arg4: memref<32x32xbf16, #tpu.memory_space<vmem>>, %arg5: memref<1x32xf32, #tpu.memory_space<vmem>>, %arg6: memref<1x32xf32, #tpu.memory_space<vmem>>, %arg7: memref<1x32xf32, #tpu.memory_space<vmem>>, %arg8: memref<32x16xbf16, #tpu.memory_space<vmem>>, %arg9: memref<1x16xf32, #tpu.memory_space<vmem>>, %arg10: memref<8x16xf32, #tpu.memory_space<vmem>>, %arg11: memref<8x32xf32, #tpu.memory_space<vmem>>) attributes {dimension_semantics = [#tpu.dimension_semantics<parallel>], iteration_bounds = array<i64: 2>, scalar_prefetch = 0 : i64, scratch_operands = 0 : i64, tpu.core_type = #tpu.core_type<tc>, window_params = [{transform_indices = @transform_0, window_bounds = array<i64: 8, 32>}, {pipeline_mode = #tpu.pipeline_mode<synchronous>, transform_indices = @transform_1, window_bounds = array<i64: 32, 32>}, {pipeline_mode = #tpu.pipeline_mode<synchronous>, transform_indices = @transform_2, window_bounds = array<i64: 1, 32>}, {pipeline_mode = #tpu.pipeline_mode<synchronous>, transform_indices = @transform_3, window_bounds = array<i64: 32, 32>}, {pipeline_mode = #tpu.pipeline_mode<synchronous>, transform_indices = @transform_4, window_bounds = array<i64: 1, 32>}, {pipeline_mode = #tpu.pipeline_mode<synchronous>, transform_indices = @transform_5, window_bounds = array<i64: 1, 32>}, {pipeline_mode = #tpu.pipeline_mode<synchronous>, transform_indices = @transform_6, window_bounds = array<i64: 1, 32>}, {pipeline_mode = #tpu.pipeline_mode<synchronous>, transform_indices = @transform_7, window_bounds = array<i64: 32, 16>}, {pipeline_mode = #tpu.pipeline_mode<synchronous>, transform_indices = @transform_8, window_bounds = array<i64: 1, 16>}, {transform_indices = @transform_9, window_bounds = array<i64: 8, 16>}, {transform_indices = @transform_10, window_bounds = array<i64: 8, 32>}]} {
    %c0 = arith.constant 0 : index
    %c0_0 = arith.constant 0 : index
    %0 = vector.load %arg3[%c0, %c0_0] : memref<1x32xf32, #tpu.memory_space<vmem>>, vector<1x32xf32>
    %c0_1 = arith.constant 0 : index
    %c0_2 = arith.constant 0 : index
    %1 = vector.load %arg5[%c0_1, %c0_2] : memref<1x32xf32, #tpu.memory_space<vmem>>, vector<1x32xf32>
    %c0_3 = arith.constant 0 : index
    %c0_4 = arith.constant 0 : index
    %2 = vector.load %arg6[%c0_3, %c0_4] : memref<1x32xf32, #tpu.memory_space<vmem>>, vector<1x32xf32>
    %c0_5 = arith.constant 0 : index
    %c0_6 = arith.constant 0 : index
    %3 = vector.load %arg7[%c0_5, %c0_6] : memref<1x32xf32, #tpu.memory_space<vmem>>, vector<1x32xf32>
    %c0_7 = arith.constant 0 : index
    %c0_8 = arith.constant 0 : index
    %4 = vector.load %arg9[%c0_7, %c0_8] : memref<1x16xf32, #tpu.memory_space<vmem>>, vector<1x16xf32>
    %c0_9 = arith.constant 0 : index
    %c0_10 = arith.constant 0 : index
    %5 = vector.load %arg1[%c0_9, %c0_10] : memref<8x32xf32, #tpu.memory_space<vmem>>, vector<8x32xf32>
    %6 = arith.truncf %5 : vector<8x32xf32> to vector<8x32xbf16>
    %c0_11 = arith.constant 0 : index
    %c0_12 = arith.constant 0 : index
    %7 = vector.load %arg2[%c0_11, %c0_12] : memref<32x32xbf16, #tpu.memory_space<vmem>>, vector<32x32xbf16>
    %cst = arith.constant dense<0.000000e+00> : vector<8x32xf32>
    %8 = tpu.matmul %6, %7, %cst {dimension_numbers = #tpu.dot_dimension_numbers<[1], [0], [0], [1], [0, 0, 1, 1], [], []>} : vector<8x32xbf16>, vector<32x32xbf16>, vector<8x32xf32> -> vector<8x32xf32>
    %9 = vector.broadcast %0 : vector<1x32xf32> to vector<8x32xf32>
    %10 = arith.addf %8, %9 : vector<8x32xf32>
    %cst_13 = arith.constant 0.000000e+00 : f32
    %11 = vector.broadcast %cst_13 : f32 to vector<8x32xf32>
    %12 = arith.maximumf %10, %11 : vector<8x32xf32>
    %13 = arith.truncf %12 : vector<8x32xf32> to vector<8x32xbf16>
    %c0_14 = arith.constant 0 : index
    %c0_15 = arith.constant 0 : index
    %14 = vector.load %arg4[%c0_14, %c0_15] : memref<32x32xbf16, #tpu.memory_space<vmem>>, vector<32x32xbf16>
    %cst_16 = arith.constant dense<0.000000e+00> : vector<8x32xf32>
    %15 = tpu.matmul %13, %14, %cst_16 {dimension_numbers = #tpu.dot_dimension_numbers<[1], [0], [0], [1], [0, 0, 1, 1], [], []>} : vector<8x32xbf16>, vector<32x32xbf16>, vector<8x32xf32> -> vector<8x32xf32>
    %16 = vector.broadcast %1 : vector<1x32xf32> to vector<8x32xf32>
    %17 = arith.addf %15, %16 : vector<8x32xf32>
    %cst_17 = arith.constant 0.000000e+00 : f32
    %18 = vector.broadcast %cst_17 : f32 to vector<8x32xf32>
    %19 = arith.maximumf %17, %18 : vector<8x32xf32>
    %cst_18 = arith.constant dense<0.000000e+00> : vector<8xf32>
    %20 = vector.multi_reduction <add>, %19, %cst_18 [1] : vector<8x32xf32> to vector<8xf32>
    %21 = vector.shape_cast %20 : vector<8xf32> to vector<8x1xf32>
    %cst_19 = arith.constant 3.125000e-02 : f32
    %22 = vector.broadcast %cst_19 : f32 to vector<8x1xf32>
    %23 = arith.mulf %21, %22 : vector<8x1xf32>
    %24 = vector.broadcast %23 : vector<8x1xf32> to vector<8x32xf32>
    %25 = arith.subf %19, %24 : vector<8x32xf32>
    %26 = arith.mulf %25, %25 : vector<8x32xf32>
    %cst_20 = arith.constant dense<0.000000e+00> : vector<8xf32>
    %27 = vector.multi_reduction <add>, %26, %cst_20 [1] : vector<8x32xf32> to vector<8xf32>
    %28 = vector.shape_cast %27 : vector<8xf32> to vector<8x1xf32>
    %cst_21 = arith.constant 3.125000e-02 : f32
    %29 = vector.broadcast %cst_21 : f32 to vector<8x1xf32>
    %30 = arith.mulf %28, %29 : vector<8x1xf32>
    %cst_22 = arith.constant 9.99999974E-6 : f32
    %31 = vector.broadcast %cst_22 : f32 to vector<8x1xf32>
    %32 = arith.addf %30, %31 : vector<8x1xf32>
    %33 = math.rsqrt %32 : vector<8x1xf32>
    %34 = vector.broadcast %33 : vector<8x1xf32> to vector<8x32xf32>
    %35 = arith.mulf %25, %34 : vector<8x32xf32>
    %36 = vector.broadcast %2 : vector<1x32xf32> to vector<8x32xf32>
    %37 = arith.mulf %35, %36 : vector<8x32xf32>
    %38 = vector.broadcast %3 : vector<1x32xf32> to vector<8x32xf32>
    %39 = arith.addf %37, %38 : vector<8x32xf32>
    %c0_23 = arith.constant 0 : index
    %c0_24 = arith.constant 0 : index
    %40 = vector.load %arg11[%c0_23, %c0_24] : memref<8x32xf32, #tpu.memory_space<vmem>>, vector<8x32xf32>
    tpu.vector_store %arg11[%c0_23, %c0_24], %39 {strides = array<i32>} : memref<8x32xf32, #tpu.memory_space<vmem>>, vector<8x32xf32>,
    %41 = arith.truncf %39 : vector<8x32xf32> to vector<8x32xbf16>
    %c0_25 = arith.constant 0 : index
    %c0_26 = arith.constant 0 : index
    %42 = vector.load %arg8[%c0_25, %c0_26] : memref<32x16xbf16, #tpu.memory_space<vmem>>, vector<32x16xbf16>
    %cst_27 = arith.constant dense<0.000000e+00> : vector<8x16xf32>
    %43 = tpu.matmul %41, %42, %cst_27 {dimension_numbers = #tpu.dot_dimension_numbers<[1], [0], [0], [1], [0, 0, 1, 1], [], []>} : vector<8x32xbf16>, vector<32x16xbf16>, vector<8x16xf32> -> vector<8x16xf32>
    %44 = vector.broadcast %4 : vector<1x16xf32> to vector<8x16xf32>
    %45 = arith.addf %43, %44 : vector<8x16xf32>
    %c0_28 = arith.constant 0 : index
    %c0_29 = arith.constant 0 : index
    %46 = vector.load %arg10[%c0_28, %c0_29] : memref<8x16xf32, #tpu.memory_space<vmem>>, vector<8x16xf32>
    tpu.vector_store %arg10[%c0_28, %c0_29], %45 {strides = array<i32>} : memref<8x16xf32, #tpu.memory_space<vmem>>, vector<8x16xf32>,
    return
  }
  func.func @transform_0(%arg0: i32) -> (i32, i32) {
    %c0_i32 = arith.constant 0 : i32
    %c0_i32_0 = arith.constant 0 : i32
    return %arg0, %c0_i32 : i32, i32
  }
  func.func @transform_1(%arg0: i32) -> (i32, i32) {
    %c0_i32 = arith.constant 0 : i32
    %c0_i32_0 = arith.constant 0 : i32
    %c0_i32_1 = arith.constant 0 : i32
    return %c0_i32, %c0_i32_0 : i32, i32
  }
  func.func @transform_2(%arg0: i32) -> (i32, i32) {
    %c0_i32 = arith.constant 0 : i32
    %c0_i32_0 = arith.constant 0 : i32
    %c0_i32_1 = arith.constant 0 : i32
    return %c0_i32, %c0_i32_0 : i32, i32
  }
  func.func @transform_3(%arg0: i32) -> (i32, i32) {
    %c0_i32 = arith.constant 0 : i32
    %c0_i32_0 = arith.constant 0 : i32
    %c0_i32_1 = arith.constant 0 : i32
    return %c0_i32, %c0_i32_0 : i32, i32
  }
  func.func @transform_4(%arg0: i32) -> (i32, i32) {
    %c0_i32 = arith.constant 0 : i32
    %c0_i32_0 = arith.constant 0 : i32
    %c0_i32_1 = arith.constant 0 : i32
    return %c0_i32, %c0_i32_0 : i32, i32
  }
  func.func @transform_5(%arg0: i32) -> (i32, i32) {
    %c0_i32 = arith.constant 0 : i32
    %c0_i32_0 = arith.constant 0 : i32
    %c0_i32_1 = arith.constant 0 : i32
    return %c0_i32, %c0_i32_0 : i32, i32
  }
  func.func @transform_6(%arg0: i32) -> (i32, i32) {
    %c0_i32 = arith.constant 0 : i32
    %c0_i32_0 = arith.constant 0 : i32
    %c0_i32_1 = arith.constant 0 : i32
    return %c0_i32, %c0_i32_0 : i32, i32
  }
  func.func @transform_7(%arg0: i32) -> (i32, i32) {
    %c0_i32 = arith.constant 0 : i32
    %c0_i32_0 = arith.constant 0 : i32
    %c0_i32_1 = arith.constant 0 : i32
    return %c0_i32, %c0_i32_0 : i32, i32
  }
  func.func @transform_8(%arg0: i32) -> (i32, i32) {
    %c0_i32 = arith.constant 0 : i32
    %c0_i32_0 = arith.constant 0 : i32
    %c0_i32_1 = arith.constant 0 : i32
    return %c0_i32, %c0_i32_0 : i32, i32
  }
  func.func @transform_9(%arg0: i32) -> (i32, i32) {
    %c0_i32 = arith.constant 0 : i32
    %c0_i32_0 = arith.constant 0 : i32
    return %arg0, %c0_i32 : i32, i32
  }
  func.func @transform_10(%arg0: i32) -> (i32, i32) {
    %c0_i32 = arith.constant 0 : i32
    %c0_i32_0 = arith.constant 0 : i32
    return %arg0, %c0_i32 : i32, i32
  }
}

module attributes {stable_mosaic.version = 11 : i64} {
  func.func @_lid_ffn_kernel(%arg0: i32, %arg1: memref<8x32xf32, #tpu.memory_space<vmem>>, %arg2: memref<32x32xbf16, #tpu.memory_space<vmem>>, %arg3: memref<1x32xf32, #tpu.memory_space<vmem>>, %arg4: memref<32x32xbf16, #tpu.memory_space<vmem>>, %arg5: memref<1x32xf32, #tpu.memory_space<vmem>>, %arg6: memref<1x32xf32, #tpu.memory_space<vmem>>, %arg7: memref<1x32xf32, #tpu.memory_space<vmem>>, %arg8: memref<32x16xbf16, #tpu.memory_space<vmem>>, %arg9: memref<1x16xf32, #tpu.memory_space<vmem>>, %arg10: memref<8x16xf32, #tpu.memory_space<vmem>>, %arg11: memref<8x32xf32, #tpu.memory_space<vmem>>) attributes {dimension_semantics = [#tpu.dimension_semantics<parallel>], iteration_bounds = array<i64: 2>, scalar_prefetch = 0 : i64, scratch_operands = 0 : i64, tpu.core_type = #tpu.core_type<tc>, window_params = [{transform_indices = @transform_0, window_bounds = array<i64: 8, 32>}, {pipeline_mode = #tpu.pipeline_mode<synchronous>, transform_indices = @transform_1, window_bounds = array<i64: 32, 32>}, {pipeline_mode = #tpu.pipeline_mode<synchronous>, transform_indices = @transform_2, window_bounds = array<i64: 1, 32>}, {pipeline_mode = #tpu.pipeline_mode<synchronous>, transform_indices = @transform_3, window_bounds = array<i64: 32, 32>}, {pipeline_mode = #tpu.pipeline_mode<synchronous>, transform_indices = @transform_4, window_bounds = array<i64: 1, 32>}, {pipeline_mode = #tpu.pipeline_mode<synchronous>, transform_indices = @transform_5, window_bounds = array<i64: 1, 32>}, {pipeline_mode = #tpu.pipeline_mode<synchronous>, transform_indices = @transform_6, window_bounds = array<i64: 1, 32>}, {pipeline_mode = #tpu.pipeline_mode<synchronous>, transform_indices = @transform_7, window_bounds = array<i64: 32, 16>}, {pipeline_mode = #tpu.pipeline_mode<synchronous>, transform_indices = @transform_8, window_bounds = array<i64: 1, 16>}, {transform_indices = @transform_9, window_bounds = array<i64: 8, 16>}, {transform_indices = @transform_10, window_bounds = array<i64: 8, 32>}]} {
    %c0 = arith.constant 0 : index
    %c0_0 = arith.constant 0 : index
    %0 = vector.load %arg3[%c0, %c0_0] : memref<1x32xf32, #tpu.memory_space<vmem>>, vector<1x32xf32>
    %c0_1 = arith.constant 0 : index
    %c0_2 = arith.constant 0 : index
    %1 = vector.load %arg5[%c0_1, %c0_2] : memref<1x32xf32, #tpu.memory_space<vmem>>, vector<1x32xf32>
    %c0_3 = arith.constant 0 : index
    %c0_4 = arith.constant 0 : index
    %2 = vector.load %arg6[%c0_3, %c0_4] : memref<1x32xf32, #tpu.memory_space<vmem>>, vector<1x32xf32>
    %c0_5 = arith.constant 0 : index
    %c0_6 = arith.constant 0 : index
    %3 = vector.load %arg7[%c0_5, %c0_6] : memref<1x32xf32, #tpu.memory_space<vmem>>, vector<1x32xf32>
    %c0_7 = arith.constant 0 : index
    %c0_8 = arith.constant 0 : index
    %4 = vector.load %arg9[%c0_7, %c0_8] : memref<1x16xf32, #tpu.memory_space<vmem>>, vector<1x16xf32>
    %c0_9 = arith.constant 0 : index
    %c0_10 = arith.constant 0 : index
    %5 = vector.load %arg1[%c0_9, %c0_10] : memref<8x32xf32, #tpu.memory_space<vmem>>, vector<8x32xf32>
    %6 = arith.truncf %5 : vector<8x32xf32> to vector<8x32xbf16>
    %c0_11 = arith.constant 0 : index
    %c0_12 = arith.constant 0 : index
    %7 = vector.load %arg2[%c0_11, %c0_12] : memref<32x32xbf16, #tpu.memory_space<vmem>>, vector<32x32xbf16>
    %cst = arith.constant dense<0.000000e+00> : vector<8x32xf32>
    %8 = tpu.matmul %6, %7, %cst {dimension_numbers = #tpu.dot_dimension_numbers<[1], [0], [0], [1], [0, 0, 1, 1], [], []>} : vector<8x32xbf16>, vector<32x32xbf16>, vector<8x32xf32> -> vector<8x32xf32>
    %9 = vector.broadcast %0 : vector<1x32xf32> to vector<8x32xf32>
    %10 = arith.addf %8, %9 : vector<8x32xf32>
    %cst_13 = arith.constant 0.000000e+00 : f32
    %11 = vector.broadcast %cst_13 : f32 to vector<8x32xf32>
    %12 = arith.maximumf %10, %11 : vector<8x32xf32>
    %13 = arith.truncf %12 : vector<8x32xf32> to vector<8x32xbf16>
    %c0_14 = arith.constant 0 : index
    %c0_15 = arith.constant 0 : index
    %14 = vector.load %arg4[%c0_14, %c0_15] : memref<32x32xbf16, #tpu.memory_space<vmem>>, vector<32x32xbf16>
    %cst_16 = arith.constant dense<0.000000e+00> : vector<8x32xf32>
    %15 = tpu.matmul %13, %14, %cst_16 {dimension_numbers = #tpu.dot_dimension_numbers<[1], [0], [0], [1], [0, 0, 1, 1], [], []>} : vector<8x32xbf16>, vector<32x32xbf16>, vector<8x32xf32> -> vector<8x32xf32>
    %16 = vector.broadcast %1 : vector<1x32xf32> to vector<8x32xf32>
    %17 = arith.addf %15, %16 : vector<8x32xf32>
    %cst_17 = arith.constant 0.000000e+00 : f32
    %18 = vector.broadcast %cst_17 : f32 to vector<8x32xf32>
    %19 = arith.maximumf %17, %18 : vector<8x32xf32>
    %cst_18 = arith.constant dense<0.000000e+00> : vector<8xf32>
    %20 = vector.multi_reduction <add>, %19, %cst_18 [1] : vector<8x32xf32> to vector<8xf32>
    %21 = vector.shape_cast %20 : vector<8xf32> to vector<8x1xf32>
    %cst_19 = arith.constant 3.125000e-02 : f32
    %22 = vector.broadcast %cst_19 : f32 to vector<8x1xf32>
    %23 = arith.mulf %21, %22 : vector<8x1xf32>
    %24 = vector.broadcast %23 : vector<8x1xf32> to vector<8x32xf32>
    %25 = arith.subf %19, %24 : vector<8x32xf32>
    %26 = arith.mulf %25, %25 : vector<8x32xf32>
    %cst_20 = arith.constant dense<0.000000e+00> : vector<8xf32>
    %27 = vector.multi_reduction <add>, %26, %cst_20 [1] : vector<8x32xf32> to vector<8xf32>
    %28 = vector.shape_cast %27 : vector<8xf32> to vector<8x1xf32>
    %cst_21 = arith.constant 3.125000e-02 : f32
    %29 = vector.broadcast %cst_21 : f32 to vector<8x1xf32>
    %30 = arith.mulf %28, %29 : vector<8x1xf32>
    %cst_22 = arith.constant 9.99999974E-6 : f32
    %31 = vector.broadcast %cst_22 : f32 to vector<8x1xf32>
    %32 = arith.addf %30, %31 : vector<8x1xf32>
    %33 = math.rsqrt %32 : vector<8x1xf32>
    %34 = vector.broadcast %33 : vector<8x1xf32> to vector<8x32xf32>
    %35 = arith.mulf %25, %34 : vector<8x32xf32>
    %36 = vector.broadcast %2 : vector<1x32xf32> to vector<8x32xf32>
    %37 = arith.mulf %35, %36 : vector<8x32xf32>
    %38 = vector.broadcast %3 : vector<1x32xf32> to vector<8x32xf32>
    %39 = arith.addf %37, %38 : vector<8x32xf32>
    %c0_23 = arith.constant 0 : index
    %c0_24 = arith.constant 0 : index
    %40 = vector.load %arg11[%c0_23, %c0_24] : memref<8x32xf32, #tpu.memory_space<vmem>>, vector<8x32xf32>
    tpu.vector_store %arg11[%c0_23, %c0_24], %39 {strides = array<i32>} : memref<8x32xf32, #tpu.memory_space<vmem>>, vector<8x32xf32>,
    %41 = arith.truncf %39 : vector<8x32xf32> to vector<8x32xbf16>
    %c0_25 = arith.constant 0 : index
    %c0_26 = arith.constant 0 : index
    %42 = vector.load %arg8[%c0_25, %c0_26] : memref<32x16xbf16, #tpu.memory_space<vmem>>, vector<32x16xbf16>
    %cst_27 = arith.constant dense<0.000000e+00> : vector<8x16xf32>
    %43 = tpu.matmul %41, %42, %cst_27 {dimension_numbers = #tpu.dot_dimension_numbers<[1], [0], [0], [1], [0, 0, 1, 1], [], []>} : vector<8x32xbf16>, vector<32x16xbf16>, vector<8x16xf32> -> vector<8x16xf32>
    %44 = vector.broadcast %4 : vector<1x16xf32> to vector<8x16xf32>
    %45 = arith.addf %43, %44 : vector<8x16xf32>
    %c0_28 = arith.constant 0 : index
    %c0_29 = arith.constant 0 : index
    %46 = vector.load %arg10[%c0_28, %c0_29] : memref<8x16xf32, #tpu.memory_space<vmem>>, vector<8x16xf32>
    tpu.vector_store %arg10[%c0_28, %c0_29], %45 {strides = array<i32>} : memref<8x16xf32, #tpu.memory_space<vmem>>, vector<8x16xf32>,
    return
  }
  func.func @transform_0(%arg0: i32) -> (i32, i32) {
    %c0_i32 = arith.constant 0 : i32
    %c0_i32_0 = arith.constant 0 : i32
    return %arg0, %c0_i32 : i32, i32
  }
  func.func @transform_1(%arg0: i32) -> (i32, i32) {
    %c0_i32 = arith.constant 0 : i32
    %c0_i32_0 = arith.constant 0 : i32
    %c0_i32_1 = arith.constant 0 : i32
    return %c0_i32, %c0_i32_0 : i32, i32
  }
  func.func @transform_2(%arg0: i32) -> (i32, i32) {
    %c0_i32 = arith.constant 0 : i32
    %c0_i32_0 = arith.constant 0 : i32
    %c0_i32_1 = arith.constant 0 : i32
    return %c0_i32, %c0_i32_0 : i32, i32
  }
  func.func @transform_3(%arg0: i32) -> (i32, i32) {
    %c0_i32 = arith.constant 0 : i32
    %c0_i32_0 = arith.constant 0 : i32
    %c0_i32_1 = arith.constant 0 : i32
    return %c0_i32, %c0_i32_0 : i32, i32
  }
  func.func @transform_4(%arg0: i32) -> (i32, i32) {
    %c0_i32 = arith.constant 0 : i32
    %c0_i32_0 = arith.constant 0 : i32
    %c0_i32_1 = arith.constant 0 : i32
    return %c0_i32, %c0_i32_0 : i32, i32
  }
  func.func @transform_5(%arg0: i32) -> (i32, i32) {
    %c0_i32 = arith.constant 0 : i32
    %c0_i32_0 = arith.constant 0 : i32
    %c0_i32_1 = arith.constant 0 : i32
    return %c0_i32, %c0_i32_0 : i32, i32
  }
  func.func @transform_6(%arg0: i32) -> (i32, i32) {
    %c0_i32 = arith.constant 0 : i32
    %c0_i32_0 = arith.constant 0 : i32
    %c0_i32_1 = arith.constant 0 : i32
    return %c0_i32, %c0_i32_0 : i32, i32
  }
  func.func @transform_7(%arg0: i32) -> (i32, i32) {
    %c0_i32 = arith.constant 0 : i32
    %c0_i32_0 = arith.constant 0 : i32
    %c0_i32_1 = arith.constant 0 : i32
    return %c0_i32, %c0_i32_0 : i32, i32
  }
  func.func @transform_8(%arg0: i32) -> (i32, i32) {
    %c0_i32 = arith.constant 0 : i32
    %c0_i32_0 = arith.constant 0 : i32
    %c0_i32_1 = arith.constant 0 : i32
    return %c0_i32, %c0_i32_0 : i32, i32
  }
  func.func @transform_9(%arg0: i32) -> (i32, i32) {
    %c0_i32 = arith.constant 0 : i32
    %c0_i32_0 = arith.constant 0 : i32
    return %arg0, %c0_i32 : i32, i32
  }
  func.func @transform_10(%arg0: i32) -> (i32, i32) {
    %c0_i32 = arith.constant 0 : i32
    %c0_i32_0 = arith.constant 0 : i32
    return %arg0, %c0_i32 : i32, i32
  }
}

</mosaic_0001>

<llo_original>
// kernel: tpu_custom_call.1
$region0: #{tpu_custom_call.1}
  #allocation0 [shape = 'u32[]', space=smem, size = 0x4, offset = 0x4, fixed_abs, tag = 'smem constant byte address 0x4 - core index']
  #allocation1 [shape = 'u32[72,128]{1,0:T(1,128)}', space=vmem, size = 0x9000, scoped, tag = 'internal scratch']
  %s0 = inlined_call_operand.vmem [shape: f32[16,32], index: 0, kind: input, shape index: {}]
  %s1 = inlined_call_operand.hbm [shape: bf16[32,32], index: 1, kind: input, shape index: {}]
  %s2 = inlined_call_operand.vmem [shape: f32[1,32], index: 2, kind: input, shape index: {}]
  %s3 = inlined_call_operand.hbm [shape: bf16[32,32], index: 3, kind: input, shape index: {}]
  %s4 = inlined_call_operand.vmem [shape: f32[1,32], index: 4, kind: input, shape index: {}]
  %s5 = inlined_call_operand.vmem [shape: f32[1,32], index: 5, kind: input, shape index: {}]
  %s6 = inlined_call_operand.vmem [shape: f32[1,32], index: 6, kind: input, shape index: {}]
  %s7 = inlined_call_operand.vmem [shape: bf16[32,16], index: 7, kind: input, shape index: {}]
  %s8 = inlined_call_operand.vmem [shape: f32[1,16], index: 8, kind: input, shape index: {}]
  %s9 = inlined_call_operand.hbm [shape: f32[16,16], index: 9, kind: output, shape index: {0}]
  %s10 = inlined_call_operand.hbm [shape: f32[16,32], index: 10, kind: output, shape index: {1}]
  %11 = xla_tuple %s9, %s10
  %s12 = sld [smem:[#allocation0]]
  $region85: #{tpu_custom_call.1} parent=0
    _
  %s14 = ssub.s32 1, %s12
  %s15 = scalar_select 0, %s14, %s12
  $region1: #{tpu_custom_call.1} parent=0
    #allocation2 [shape = 'u8[8192]{0}', space=vmem, size = 0x2000, scoped, tag = 'input window, operand 1, single buffered']
    #allocation3 [shape = 's32[2]{0}', space=sflag, size = 0x8, scoped, tag = 'scoped memory for tpu_custom_call.1']
    #allocation4 [shape = 's32[2]{0}', space=sflag, size = 0x8, scoped, tag = 'scoped memory for tpu_custom_call.1']
    #allocation5 [shape = 'u8[8192]{0}', space=vmem, size = 0x2000, scoped, tag = 'input window, operand 3, single buffered']
    #allocation6 [shape = 's32[1]{0}', space=sflag, size = 0x4, scoped, tag = 'scoped memory for tpu_custom_call.1']
    #allocation7 [shape = 'u8[8192]{0}', space=vmem, size = 0x2000, scoped, tag = 'output window, operand 0']
    #allocation8 [shape = 'u8[8192]{0}', space=vmem, size = 0x2000, scoped, tag = 'output window, operand 1']
    #allocation9 [shape = 's32[2]{0}', space=sflag, size = 0x8, scoped, tag = 'scoped memory for tpu_custom_call.1']
    %16 = vsyncpa [#allocation3], 0
    %17 = vsyncpa [#allocation6], 0
    %18 = vsyncpa [#allocation4], 0
    %s19 = scalar_lea.sflag [#allocation4], 1
    %20 = vsyncpa %s19, 0
    %21 = vsyncpa [#allocation9], 0
    %s22 = scalar_lea.sflag [#allocation9], 1
    %23 = vsyncpa %s22, 0
    loop: start=0, step=1, limit=4
    $region2: #{tpu_custom_call.1} parent=1 // loop_pre_header
      _
    $region3: #{tpu_custom_call.1} parent=1 // loop_header
      %s25 = sphi 0, %s29
      %p26 = scmp.ge.s32.totalorder %s25, 4
      %s35 = sphi 0, %s37
      %s38 = sphi 0, %s35
      %s39 = sphi 0, %s38
      %s55 = sphi 0, %s39
      %s59 = sphi 0, %s59
      %s61 = sphi 0, %s59
      %s62 = sphi 0, %s61
      %s76 = sphi 0, %s62
      %s80 = sphi 0, %s80
      %s82 = sphi 0, %s80
      %s83 = sphi 0, %s82
      %s97 = sphi 0, %s83
      %s101 = sphi 0, %s101
      %s103 = sphi 0, %s101
      %s104 = sphi 0, %s103
      %s118 = sphi 0, %s104
      %s122 = sphi 0, %s122
      %s124 = sphi 0, %s122
      %s125 = sphi 0, %s124
      %s139 = sphi 0, %s125
      %s143 = sphi 0, %s143
      %s145 = sphi 0, %s143
      %s146 = sphi 0, %s145
      %s160 = sphi 0, %s146
      %s164 = sphi 0, %s164
      %s166 = sphi 0, %s164
      %s167 = sphi 0, %s166
      %s181 = sphi 0, %s167
      %s185 = sphi 0, %s185
      %s187 = sphi 0, %s185
      %s188 = sphi 0, %s187
      %s202 = sphi 0, %s188
      %s206 = sphi 0, %s206
      %s208 = sphi 0, %s206
      %s209 = sphi 0, %s208
      %s223 = sphi 0, %s209
      %s229 = sphi 0, %s231
      %s232 = sphi 0, %s229
      %s233 = sphi 0, %s232
      %s249 = sphi 0, %s233
      %s255 = sphi 0, %s257
      %s258 = sphi 0, %s255
      %s259 = sphi 0, %s258
      %s275 = sphi 0, %s259
    $region4: #{tpu_custom_call.1} parent=1 // loop_header_branch
      %28 = sbr.rel (%p26) target = $region8
    $region5: #{tpu_custom_call.1} parent=1 // loop_body
      %s30 = ssub.s32 %s25, 1
      %s31 = ssub.s32 %s25, 2
      %s32 = sadd.s32 %s25, 1
      %s33 = ssub.s32 %s25, %s32
      %p34 = scmp.eq.s32.totalorder %s33, 0
      %s36 = sadd.s32 %s35, 1
      %s37 = scalar_select %p34, %s35, %s36
      %p40 = pneg %p34
      %p41 = scmp.eq.s32.totalorder %s25, 1
      %p42 = por %p40, %p41
      %p43 = scmp.ne.s32.totalorder %s35, %s38
      %p44 = scmp.eq.s32.totalorder %s25, 0
      %p45 = por %p43, %p44
      %p46 = scmp.ne.s32.totalorder %s35, %s38
      %p47 = scmp.eq.s32.totalorder %s30, 1
      %p48 = por %p46, %p47
      %p49 = scmp.ne.s32.totalorder %s38, %s39
      %p50 = scmp.eq.s32.totalorder %s30, 0
      %p51 = por %p49, %p50
      %p52 = scmp.ne.s32.totalorder %s38, %s39
      %p53 = scmp.eq.s32.totalorder %s31, 1
      %p54 = por %p52, %p53
      %p56 = scmp.ne.s32.totalorder %s39, %s55
      %p57 = scmp.eq.s32.totalorder %s31, 0
      %p58 = por %p56, %p57
      %s60 = sadd.s32 %s59, 1
      %p63 = scmp.eq.s32.totalorder %s25, 1
      %p64 = scmp.ne.s32.totalorder %s59, %s61
      %p65 = scmp.eq.s32.totalorder %s25, 0
      %p66 = por %p64, %p65
      %p67 = scmp.ne.s32.totalorder %s59, %s61
      %p68 = scmp.eq.s32.totalorder %s30, 1
      %p69 = por %p67, %p68
      %p70 = scmp.ne.s32.totalorder %s61, %s62
      %p71 = scmp.eq.s32.totalorder %s30, 0
      %p72 = por %p70, %p71
      %p73 = scmp.ne.s32.totalorder %s61, %s62
      %p74 = scmp.eq.s32.totalorder %s31, 1
      %p75 = por %p73, %p74
      %p77 = scmp.ne.s32.totalorder %s62, %s76
      %p78 = scmp.eq.s32.totalorder %s31, 0
      %p79 = por %p77, %p78
      %s81 = sadd.s32 %s80, 1
      %p84 = scmp.eq.s32.totalorder %s25, 1
      %p85 = scmp.ne.s32.totalorder %s80, %s82
      %p86 = scmp.eq.s32.totalorder %s25, 0
      %p87 = por %p85, %p86
      %p88 = scmp.ne.s32.totalorder %s80, %s82
      %p89 = scmp.eq.s32.totalorder %s30, 1
      %p90 = por %p88, %p89
      %p91 = scmp.ne.s32.totalorder %s82, %s83
      %p92 = scmp.eq.s32.totalorder %s30, 0
      %p93 = por %p91, %p92
      %p94 = scmp.ne.s32.totalorder %s82, %s83
      %p95 = scmp.eq.s32.totalorder %s31, 1
      %p96 = por %p94, %p95
      %p98 = scmp.ne.s32.totalorder %s83, %s97
      %p99 = scmp.eq.s32.totalorder %s31, 0
      %p100 = por %p98, %p99
      %s102 = sadd.s32 %s101, 1
      %p105 = scmp.eq.s32.totalorder %s25, 1
      %p106 = scmp.ne.s32.totalorder %s101, %s103
      %p107 = scmp.eq.s32.totalorder %s25, 0
      %p108 = por %p106, %p107
      %p109 = scmp.ne.s32.totalorder %s101, %s103
      %p110 = scmp.eq.s32.totalorder %s30, 1
      %p111 = por %p109, %p110
      %p112 = scmp.ne.s32.totalorder %s103, %s104
      %p113 = scmp.eq.s32.totalorder %s30, 0
      %p114 = por %p112, %p113
      %p115 = scmp.ne.s32.totalorder %s103, %s104
      %p116 = scmp.eq.s32.totalorder %s31, 1
      %p117 = por %p115, %p116
      %p119 = scmp.ne.s32.totalorder %s104, %s118
      %p120 = scmp.eq.s32.totalorder %s31, 0
      %p121 = por %p119, %p120
      %s123 = sadd.s32 %s122, 1
      %p126 = scmp.eq.s32.totalorder %s25, 1
      %p127 = scmp.ne.s32.totalorder %s122, %s124
      %p128 = scmp.eq.s32.totalorder %s25, 0
      %p129 = por %p127, %p128
      %p130 = scmp.ne.s32.totalorder %s122, %s124
      %p131 = scmp.eq.s32.totalorder %s30, 1
      %p132 = por %p130, %p131
      %p133 = scmp.ne.s32.totalorder %s124, %s125
      %p134 = scmp.eq.s32.totalorder %s30, 0
      %p135 = por %p133, %p134
      %p136 = scmp.ne.s32.totalorder %s124, %s125
      %p137 = scmp.eq.s32.totalorder %s31, 1
      %p138 = por %p136, %p137
      %p140 = scmp.ne.s32.totalorder %s125, %s139
      %p141 = scmp.eq.s32.totalorder %s31, 0
      %p142 = por %p140, %p141
      %s144 = sadd.s32 %s143, 1
      %p147 = scmp.eq.s32.totalorder %s25, 1
      %p148 = scmp.ne.s32.totalorder %s143, %s145
      %p149 = scmp.eq.s32.totalorder %s25, 0
      %p150 = por %p148, %p149
      %p151 = scmp.ne.s32.totalorder %s143, %s145
      %p152 = scmp.eq.s32.totalorder %s30, 1
      %p153 = por %p151, %p152
      %p154 = scmp.ne.s32.totalorder %s145, %s146
      %p155 = scmp.eq.s32.totalorder %s30, 0
      %p156 = por %p154, %p155
      %p157 = scmp.ne.s32.totalorder %s145, %s146
      %p158 = scmp.eq.s32.totalorder %s31, 1
      %p159 = por %p157, %p158
      %p161 = scmp.ne.s32.totalorder %s146, %s160
      %p162 = scmp.eq.s32.totalorder %s31, 0
      %p163 = por %p161, %p162
      %s165 = sadd.s32 %s164, 1
      %p168 = scmp.eq.s32.totalorder %s25, 1
      %p169 = scmp.ne.s32.totalorder %s164, %s166
      %p170 = scmp.eq.s32.totalorder %s25, 0
      %p171 = por %p169, %p170
      %p172 = scmp.ne.s32.totalorder %s164, %s166
      %p173 = scmp.eq.s32.totalorder %s30, 1
      %p174 = por %p172, %p173
      %p175 = scmp.ne.s32.totalorder %s166, %s167
      %p176 = scmp.eq.s32.totalorder %s30, 0
      %p177 = por %p175, %p176
      %p178 = scmp.ne.s32.totalorder %s166, %s167
      %p179 = scmp.eq.s32.totalorder %s31, 1
      %p180 = por %p178, %p179
      %p182 = scmp.ne.s32.totalorder %s167, %s181
      %p183 = scmp.eq.s32.totalorder %s31, 0
      %p184 = por %p182, %p183
      %s186 = sadd.s32 %s185, 1
      %p189 = scmp.eq.s32.totalorder %s25, 1
      %p190 = scmp.ne.s32.totalorder %s185, %s187
      %p191 = scmp.eq.s32.totalorder %s25, 0
      %p192 = por %p190, %p191
      %p193 = scmp.ne.s32.totalorder %s185, %s187
      %p194 = scmp.eq.s32.totalorder %s30, 1
      %p195 = por %p193, %p194
      %p196 = scmp.ne.s32.totalorder %s187, %s188
      %p197 = scmp.eq.s32.totalorder %s30, 0
      %p198 = por %p196, %p197
      %p199 = scmp.ne.s32.totalorder %s187, %s188
      %p200 = scmp.eq.s32.totalorder %s31, 1
      %p201 = por %p199, %p200
      %p203 = scmp.ne.s32.totalorder %s188, %s202
      %p204 = scmp.eq.s32.totalorder %s31, 0
      %p205 = por %p203, %p204
      %s207 = sadd.s32 %s206, 1
      %p210 = scmp.eq.s32.totalorder %s25, 1
      %p211 = scmp.ne.s32.totalorder %s206, %s208
      %p212 = scmp.eq.s32.totalorder %s25, 0
      %p213 = por %p211, %p212
      %p214 = scmp.ne.s32.totalorder %s206, %s208
      %p215 = scmp.eq.s32.totalorder %s30, 1
      %p216 = por %p214, %p215
      %p217 = scmp.ne.s32.totalorder %s208, %s209
      %p218 = scmp.eq.s32.totalorder %s30, 0
      %p219 = por %p217, %p218
      %p220 = scmp.ne.s32.totalorder %s208, %s209
      %p221 = scmp.eq.s32.totalorder %s31, 1
      %p222 = por %p220, %p221
      %p224 = scmp.ne.s32.totalorder %s209, %s223
      %p225 = scmp.eq.s32.totalorder %s31, 0
      %p226 = por %p224, %p225
      %s227 = ssub.s32 %s25, %s32
      %p228 = scmp.eq.s32.totalorder %s227, 0
      %s230 = sadd.s32 %s229, 1
      %s231 = scalar_select %p228, %s229, %s230
      %p234 = pneg %p228
      %p235 = scmp.eq.s32.totalorder %s25, 1
      %p236 = por %p234, %p235
      %p237 = scmp.ne.s32.totalorder %s229, %s232
      %p238 = scmp.eq.s32.totalorder %s25, 0
      %p239 = por %p237, %p238
      %p240 = scmp.ne.s32.totalorder %s229, %s232
      %p241 = scmp.eq.s32.totalorder %s30, 1
      %p242 = por %p240, %p241
      %p243 = scmp.ne.s32.totalorder %s232, %s233
      %p244 = scmp.eq.s32.totalorder %s30, 0
      %p245 = por %p243, %p244
      %p246 = scmp.ne.s32.totalorder %s232, %s233
      %p247 = scmp.eq.s32.totalorder %s31, 1
      %p248 = por %p246, %p247
      %p250 = scmp.ne.s32.totalorder %s233, %s249
      %p251 = scmp.eq.s32.totalorder %s31, 0
      %p252 = por %p250, %p251
      %s253 = ssub.s32 %s25, %s32
      %p254 = scmp.eq.s32.totalorder %s253, 0
      %s256 = sadd.s32 %s255, 1
      %s257 = scalar_select %p254, %s255, %s256
      %p260 = pneg %p254
      %p261 = scmp.eq.s32.totalorder %s25, 1
      %p262 = por %p260, %p261
      %p263 = scmp.ne.s32.totalorder %s255, %s258
      %p264 = scmp.eq.s32.totalorder %s25, 0
      %p265 = por %p263, %p264
      %p266 = scmp.ne.s32.totalorder %s255, %s258
      %p267 = scmp.eq.s32.totalorder %s30, 1
      %p268 = por %p266, %p267
      %p269 = scmp.ne.s32.totalorder %s258, %s259
      %p270 = scmp.eq.s32.totalorder %s30, 0
      %p271 = por %p269, %p270
      %p272 = scmp.ne.s32.totalorder %s258, %s259
      %p273 = scmp.eq.s32.totalorder %s31, 1
      %p274 = por %p272, %p273
      %p276 = scmp.ne.s32.totalorder %s259, %s275
      %p277 = scmp.eq.s32.totalorder %s31, 0
      %p278 = por %p276, %p277
      %p279 = scmp.le.s32.totalorder 1, %s25
      %p280 = scmp.lt.s32.totalorder %s25, 3
      %p281 = pnand %p279, %p280
      %p282 = pneg %p281
      // Predicated region
      $region9: #{tpu_custom_call.1} parent=5 // pred_check
        _
      $region10: #{tpu_custom_call.1} parent=5 // pred_check_branch
        %284 = sbr.rel (%p281) target = $region12
      $region11: #{tpu_custom_call.1} parent=5 // pred_region
        %s285 = ssub.s32 %s25, 1
        // Predicated region
        $region13: #{tpu_custom_call.1} parent=11 // pred_check
          %p286 = pneg %p72
        $region14: #{tpu_custom_call.1} parent=11 // pred_check_branch
          %288 = sbr.rel (%p286) target = $region16
        $region15: #{tpu_custom_call.1} parent=11 // pred_region
          %290 = vsyncadd [#allocation3], 0
          %s291 = sshll.u32 %s1, 4
          %s292 = int_to_ptr.hbm [resolvable:$true] %s291
          %s293 = sshll.u32 [#allocation2], 4
          %s294 = int_to_ptr.vmem [resolvable:$true] %s293
          %299 = dma.hbm_to_vmem [thread:$0]  %s292, 256, %s294, [#allocation3], 64, 64, 4
        $region16: #{tpu_custom_call.1} parent=11 // pred_fallthru
          _
        // Predicated region
        $region17: #{tpu_custom_call.1} parent=11 // pred_check
          %p300 = pneg %p93
        $region18: #{tpu_custom_call.1} parent=11 // pred_check_branch
          %302 = sbr.rel (%p300) target = $region20
        $region19: #{tpu_custom_call.1} parent=11 // pred_region
          _
        $region20: #{tpu_custom_call.1} parent=11 // pred_fallthru
          _
        // Predicated region
        $region21: #{tpu_custom_call.1} parent=11 // pred_check
          %p303 = pneg %p114
        $region22: #{tpu_custom_call.1} parent=11 // pred_check_branch
          %305 = sbr.rel (%p303) target = $region24
        $region23: #{tpu_custom_call.1} parent=11 // pred_region
          %307 = vsyncadd [#allocation6], 0
          %s308 = sshll.u32 %s3, 4
          %s309 = int_to_ptr.hbm [resolvable:$true] %s308
          %s310 = sshll.u32 [#allocation5], 4
          %s311 = int_to_ptr.vmem [resolvable:$true] %s310
          %316 = dma.hbm_to_vmem [thread:$0]  %s309, 256, %s311, [#allocation6], 64, 64, 4
        $region24: #{tpu_custom_call.1} parent=11 // pred_fallthru
          _
        // Predicated region
        $region25: #{tpu_custom_call.1} parent=11 // pred_check
          %p317 = pneg %p135
        $region26: #{tpu_custom_call.1} parent=11 // pred_check_branch
          %319 = sbr.rel (%p317) target = $region28
        $region27: #{tpu_custom_call.1} parent=11 // pred_region
          _
        $region28: #{tpu_custom_call.1} parent=11 // pred_fallthru
          _
        // Predicated region
        $region29: #{tpu_custom_call.1} parent=11 // pred_check
          %p320 = pneg %p156
        $region30: #{tpu_custom_call.1} parent=11 // pred_check_branch
          %322 = sbr.rel (%p320) target = $region32
        $region31: #{tpu_custom_call.1} parent=11 // pred_region
          _
        $region32: #{tpu_custom_call.1} parent=11 // pred_fallthru
          _
        // Predicated region
        $region33: #{tpu_custom_call.1} parent=11 // pred_check
          %p323 = pneg %p177
        $region34: #{tpu_custom_call.1} parent=11 // pred_check_branch
          %325 = sbr.rel (%p323) target = $region36
        $region35: #{tpu_custom_call.1} parent=11 // pred_region
          _
        $region36: #{tpu_custom_call.1} parent=11 // pred_fallthru
          _
        // Predicated region
        $region37: #{tpu_custom_call.1} parent=11 // pred_check
          %p326 = pneg %p198
        $region38: #{tpu_custom_call.1} parent=11 // pred_check_branch
          %328 = sbr.rel (%p326) target = $region40
        $region39: #{tpu_custom_call.1} parent=11 // pred_region
          _
        $region40: #{tpu_custom_call.1} parent=11 // pred_fallthru
          _
        // Predicated region
        $region41: #{tpu_custom_call.1} parent=11 // pred_check
          %p329 = pneg %p219
        $region42: #{tpu_custom_call.1} parent=11 // pred_check_branch
          %331 = sbr.rel (%p329) target = $region44
        $region43: #{tpu_custom_call.1} parent=11 // pred_region
          _
        $region44: #{tpu_custom_call.1} parent=11 // pred_fallthru
          _
      $region12: #{tpu_custom_call.1} parent=5 // pred_fallthru
        _
      %p332 = scmp.lt.s32.totalorder %s25, 2
      // Predicated region
      $region45: #{tpu_custom_call.1} parent=5 // pred_check
        %p333 = pneg %p332
      $region46: #{tpu_custom_call.1} parent=5 // pred_check_branch
        %335 = sbr.rel (%p333) target = $region48
      $region47: #{tpu_custom_call.1} parent=5 // pred_region
        // Predicated region
        $region49: #{tpu_custom_call.1} parent=47 // pred_check
          %p336 = pneg %p45
        $region50: #{tpu_custom_call.1} parent=47 // pred_check_branch
          %338 = sbr.rel (%p336) target = $region52
        $region51: #{tpu_custom_call.1} parent=47 // pred_region
          %p339 = scmp.lt.s32.totalorder %s25, 1
          %s340 = scalar_select %p339, %s25, 1
          %s341 = smul.addr %s340, 8
          %s342 = scalar_lea.vmem %s0, %s341
        $region52: #{tpu_custom_call.1} parent=47 // pred_fallthru
          _
      $region48: #{tpu_custom_call.1} parent=5 // pred_fallthru
        _
      %p343 = scmp.le.s32.totalorder 1, %s25
      %p344 = scmp.lt.s32.totalorder %s25, 3
      %p345 = pnand %p343, %p344
      %p346 = pneg %p345
      // Predicated region
      $region53: #{tpu_custom_call.1} parent=5 // pred_check
        _
      $region54: #{tpu_custom_call.1} parent=5 // pred_check_branch
        %348 = sbr.rel (%p345) target = $region56
      $region55: #{tpu_custom_call.1} parent=5 // pred_region
        %s349 = ssub.s32 %s25, 1
        // Predicated region
        $region57: #{tpu_custom_call.1} parent=55 // pred_check
          %p350 = pneg %p72
        $region58: #{tpu_custom_call.1} parent=55 // pred_check_branch
          %352 = sbr.rel (%p350) target = $region60
        $region59: #{tpu_custom_call.1} parent=55 // pred_region
          %354 = dma.done [#allocation3], 256
        $region60: #{tpu_custom_call.1} parent=55 // pred_fallthru
          _
        // Predicated region
        $region61: #{tpu_custom_call.1} parent=55 // pred_check
          %p355 = pneg %p114
        $region62: #{tpu_custom_call.1} parent=55 // pred_check_branch
          %357 = sbr.rel (%p355) target = $region64
        $region63: #{tpu_custom_call.1} parent=55 // pred_region
          %359 = dma.done [#allocation6], 256
        $region64: #{tpu_custom_call.1} parent=55 // pred_fallthru
          _
        %p360 = scmp.lt.s32.totalorder %s30, 1
        %s361 = scalar_select %p360, %s30, 1
        %s362 = smul.addr %s361, 8
        %s363 = scalar_lea.vmem %s0, %s362
        %p364 = pneg %p51
        %p365 = pneg %p48
        %p366 = pneg %p72
        %p367 = pneg %p69
        %p368 = pneg %p93
        %p369 = pneg %p90
        %p370 = pneg %p114
        %p371 = pneg %p111
        %p372 = pneg %p135
        %p373 = pneg %p132
        %p374 = pneg %p156
        %p375 = pneg %p153
        %p376 = pneg %p177
        %p377 = pneg %p174
        %p378 = pneg %p198
        %p379 = pneg %p195
        %p380 = pneg %p219
        %p381 = pneg %p216
        %p382 = pneg %p245
        %p383 = pneg %p242
        %s384 = sand.u32 %s232, 1
        %s385 = scalar_lea.sflag [#allocation4], %s384
        %s386 = sand.u32 %s232, 1
        %s387 = smul.addr %s386, 8
        %s388 = scalar_lea.vmem [#allocation7], %s387
        %p389 = pneg %p271
        %p390 = pneg %p268
        %s391 = sand.u32 %s258, 1
        %s392 = scalar_lea.sflag [#allocation9], %s391
        %s393 = sand.u32 %s258, 1
        %s394 = smul.addr %s393, 8
        %s395 = scalar_lea.vmem [#allocation8], %s394
        %p396 = scmp.lt.s32.totalorder %s30, 1
        %s397 = scalar_select %p396, %s30, 1
        %s398 = smul.addr %s397, 8
        %s399 = scalar_lea.vmem %s0, %s398
        %v401 = vld [vmem:[%s2] sm:$0x1]
        %v402 = vld [vmem:[%s4] sm:$0x1]
        %v403 = vld [vmem:[%s5] sm:$0x1]
        %v404 = vld [vmem:[%s6] sm:$0x1]
        %v405 = vld [vmem:[%s8] sm:$0x1]
        %v406 = vld [vmem:[%s399] sm:$0xff]
        %v407 = vpack.c.bf16 %v406, %v406
        %v408 = vld [vmem:[#allocation2] sm:$0xf]
        %v409 = vld [vmem:[#allocation2 + $0x4] sm:$0xf]
        %v410 = vld [vmem:[#allocation2 + $0x8] sm:$0xf]
        %v411 = vld [vmem:[#allocation2 + $0xc] sm:$0xf]
        %v413 = vperm.slane %v401, 0
        %v419 = vunpack.c.l.b16 %v408
        %v420 = vunpack.c.l.b16 %v409
        %v421 = vunpack.c.l.b16 %v410
        %v422 = vunpack.c.l.b16 %v411
        %v423 = vpack.c.b16 %v420, %v419
        %v424 = vpack.c.b16 %v422, %v421
        %vm427 = vcmask 261120
        %v429 = vsel %vm427, %v407, 0
        %431 = vmatpush.bf16.msra.mxu0 0
        %432 = vmatpush.bf16.msra.mxu0 0
        %433 = vmatpush.bf16.msra.mxu0 0
        %434 = vmatpush.bf16.msra.mxu0 0
        %435 = vmatpush.bf16.msra.mxu0 0
        %436 = vmatpush.bf16.msra.mxu0 0
        %437 = vmatpush.bf16.msra.mxu0 %v424
        %438 = vmatpush.bf16.msra.mxu0 %v423
        %439 = vmatmul.bf16.gmra.mxu0 %v429
        %v440 = vpop.f32.mrf.mxu0
        %v441 = vadd.f32 %v413, %v440
        %v442 = vpop.f32.mrf.mxu0
        %443 = vdwg.mxu0
        %v444 = vmax.f32 %v441, 0.0
        %v445 = vpack.c.bf16 %v444, %v444
        %v446 = vld [vmem:[#allocation5] sm:$0xf]
        %v447 = vld [vmem:[#allocation5 + $0x4] sm:$0xf]
        %v448 = vld [vmem:[#allocation5 + $0x8] sm:$0xf]
        %v449 = vld [vmem:[#allocation5 + $0xc] sm:$0xf]
        %v451 = vperm.slane %v402, 0
        %v457 = vunpack.c.l.b16 %v446
        %v458 = vunpack.c.l.b16 %v447
        %v459 = vunpack.c.l.b16 %v448
        %v460 = vunpack.c.l.b16 %v449
        %v461 = vpack.c.b16 %v458, %v457
        %v462 = vpack.c.b16 %v460, %v459
        %v466 = vsel %vm427, %v445, 0
        %468 = vmatpush.bf16.msra.mxu0 0
        %469 = vmatpush.bf16.msra.mxu0 0
        %470 = vmatpush.bf16.msra.mxu0 0
        %471 = vmatpush.bf16.msra.mxu0 0
        %472 = vmatpush.bf16.msra.mxu0 0
        %473 = vmatpush.bf16.msra.mxu0 0
        %474 = vmatpush.bf16.msra.mxu0 %v462
        %475 = vmatpush.bf16.msra.mxu0 %v461
        %476 = vmatmul.bf16.gmra.mxu0 %v466
        %v477 = vpop.f32.mrf.mxu0
        %v478 = vadd.f32 %v451, %v477
        %v479 = vpop.f32.mrf.mxu0
        %480 = vdwg.mxu0
        %v481 = vmax.f32 %v478, 0.0
        %v482 = vsel %vm427, %v481, 0.0
        %483 = vadd.xlane.f32.xlu0 %v482
        %v484 = vpop.xlane.xlu0 %483
        %v485 = vmul.f32 %v484, 0.03125
        %v486 = vsub.f32 %v481, %v485
        %v487 = vmul.f32 %v486, %v486
        %v488 = vsel %vm427, %v487, 0.0
        %489 = vadd.xlane.f32.xlu0 %v488
        %v490 = vpop.xlane.xlu0 %489
        %v491 = vmul.f32 %v490, 0.03125
        %v492 = vadd.f32 %v491, 1e-05
        %v493 = vrsqrt.pop %v492
        %v494 = vmul.f32 %v493, %v492
        %v495 = vmul.f32 %v494, %v493
        %v496 = vmul.f32 0.5, %v495
        %v497 = vsub.f32 1.5, %v496
        %v498 = vmul.f32 %v493, %v497
        %vm499 = vweird.f32 %v492
        %vm500 = vweird.f32 %v493
        %vm501 = vmor %vm499, %vm500
        %v502 = vsel %vm501, %v493, %v498
        %v503 = vmul.f32 %v486, %v502
        %v505 = vperm.slane %v403, 0
        %v507 = vmul.f32 %v503, %v505
        %v509 = vperm.slane %v404, 0
        %v511 = vadd.f32 %v507, %v509
        %512 = vst.msk [vmem:[%s395] sm:$0xff] %vm427, %v511
        %v513 = vpack.c.bf16 %v511, %v511
        %v514 = vld [vmem:[%s7] sm:$0xf]
        %v515 = vld [vmem:[%s7 + $0x4] sm:$0xf]
        %v516 = vld [vmem:[%s7 + $0x8] sm:$0xf]
        %v517 = vld [vmem:[%s7 + $0xc] sm:$0xf]
        %v519 = vperm.slane %v405, 0
        %v525 = vunpack.c.l.b16 %v514
        %v526 = vunpack.c.l.b16 %v515
        %v527 = vunpack.c.l.b16 %v516
        %v528 = vunpack.c.l.b16 %v517
        %v529 = vpack.c.b16 %v526, %v525
        %v530 = vpack.c.b16 %v528, %v527
        %v534 = vsel %vm427, %v513, 0
        %536 = vmatpush.bf16.msra.mxu0 0
        %537 = vmatpush.bf16.msra.mxu0 0
        %538 = vmatpush.bf16.msra.mxu0 0
        %539 = vmatpush.bf16.msra.mxu0 0
        %540 = vmatpush.bf16.msra.mxu0 0
        %541 = vmatpush.bf16.msra.mxu0 0
        %542 = vmatpush.bf16.msra.mxu0 %v530
        %543 = vmatpush.bf16.msra.mxu0 %v529
        %544 = vmatmul.bf16.gmra.mxu0 %v534
        %v545 = vpop.f32.mrf.mxu0
        %v546 = vadd.f32 %v519, %v545
        %v547 = vpop.f32.mrf.mxu0
        %548 = vdwg.mxu0
        %vm549 = vcmask 130048
        %550 = vst.msk [vmem:[%s388] sm:$0xff] %vm549, %v546
        %s551 = sand.u32 %s232, 1
        %s552 = scalar_lea.sflag [#allocation4], %s551
        %s553 = sand.u32 %s232, 1
        %s554 = smul.addr %s553, 8
        %s555 = scalar_lea.vmem [#allocation7], %s554
        %s556 = sand.u32 %s258, 1
        %s557 = scalar_lea.sflag [#allocation9], %s556
        %s558 = sand.u32 %s258, 1
        %s559 = smul.addr %s558, 8
        %s560 = scalar_lea.vmem [#allocation8], %s559
        // Predicated region
        $region65: #{tpu_custom_call.1} parent=55 // pred_check
          %p561 = pneg %p242
        $region66: #{tpu_custom_call.1} parent=55 // pred_check_branch
          %563 = sbr.rel (%p561) target = $region68
        $region67: #{tpu_custom_call.1} parent=55 // pred_region
          %565 = vsyncadd %s552, 0
          %s566 = smul.addr %s30, 8
          %s567 = scalar_lea.hbm %s9, %s566
          %s569 = sshll.u32 %s555, 4
          %s570 = int_to_ptr.vmem [resolvable:$true] %s569
          %s571 = sshll.u32 %s567, 4
          %s572 = int_to_ptr.hbm [resolvable:$true] %s571
          %574 = dma.vmem_to_hbm [thread:$0]  %s570, 128, %s572, %s552
        $region68: #{tpu_custom_call.1} parent=55 // pred_fallthru
          _
        // Predicated region
        $region69: #{tpu_custom_call.1} parent=55 // pred_check
          %p575 = pneg %p268
        $region70: #{tpu_custom_call.1} parent=55 // pred_check_branch
          %577 = sbr.rel (%p575) target = $region72
        $region71: #{tpu_custom_call.1} parent=55 // pred_region
          %579 = vsyncadd %s557, 0
          %s580 = smul.addr %s30, 8
          %s581 = scalar_lea.hbm %s10, %s580
          %s583 = sshll.u32 %s560, 4
          %s584 = int_to_ptr.vmem [resolvable:$true] %s583
          %s585 = sshll.u32 %s581, 4
          %s586 = int_to_ptr.hbm [resolvable:$true] %s585
          %588 = dma.vmem_to_hbm [thread:$0]  %s584, 128, %s586, %s557
        $region72: #{tpu_custom_call.1} parent=55 // pred_fallthru
          _
      $region56: #{tpu_custom_call.1} parent=5 // pred_fallthru
        _
      %p589 = scmp.le.s32.totalorder 2, %s25
      // Predicated region
      $region73: #{tpu_custom_call.1} parent=5 // pred_check
        %p590 = pneg %p589
      $region74: #{tpu_custom_call.1} parent=5 // pred_check_branch
        %592 = sbr.rel (%p590) target = $region76
      $region75: #{tpu_custom_call.1} parent=5 // pred_region
        %s593 = ssub.s32 %s25, 2
        // Predicated region
        $region77: #{tpu_custom_call.1} parent=75 // pred_check
          %p594 = pneg %p248
        $region78: #{tpu_custom_call.1} parent=75 // pred_check_branch
          %596 = sbr.rel (%p594) target = $region80
        $region79: #{tpu_custom_call.1} parent=75 // pred_region
          %s597 = sand.u32 %s233, 1
          %s598 = scalar_lea.sflag [#allocation4], %s597
          %s599 = sand.u32 %s233, 1
          %s600 = smul.addr %s599, 8
          %s601 = scalar_lea.vmem [#allocation7], %s600
          %603 = dma.done %s598, 128
        $region80: #{tpu_custom_call.1} parent=75 // pred_fallthru
          _
        // Predicated region
        $region81: #{tpu_custom_call.1} parent=75 // pred_check
          %p604 = pneg %p274
        $region82: #{tpu_custom_call.1} parent=75 // pred_check_branch
          %606 = sbr.rel (%p604) target = $region84
        $region83: #{tpu_custom_call.1} parent=75 // pred_region
          %s607 = sand.u32 %s259, 1
          %s608 = scalar_lea.sflag [#allocation9], %s607
          %s609 = sand.u32 %s259, 1
          %s610 = smul.addr %s609, 8
          %s611 = scalar_lea.vmem [#allocation8], %s610
          %613 = dma.done %s608, 128
        $region84: #{tpu_custom_call.1} parent=75 // pred_fallthru
          _
      $region76: #{tpu_custom_call.1} parent=5 // pred_fallthru
        _
    $region6: #{tpu_custom_call.1} parent=1 // loop_footer
      %s29 = sadd.s32 1, %s25
    $region7: #{tpu_custom_call.1} parent=1 // loop_footer_branch
      %24 = sbr.rel target = $region3
    $region8: #{tpu_custom_call.1} parent=1 // loop_exit
      _
    %614 = vsyncpa [#allocation3], 1
    %s615 = scalar_lea.sflag [#allocation3], 1
    %616 = vsyncpa %s615, 1
    %617 = vsyncpa [#allocation6], 1
    %618 = vsyncpa [#allocation4], 1
    %s619 = scalar_lea.sflag [#allocation4], 1
    %620 = vsyncpa %s619, 1
    %621 = vsyncpa [#allocation9], 1
    %s622 = scalar_lea.sflag [#allocation9], 1
    %623 = vsyncpa %s622, 1

// kernel: tpu_custom_call.1
$region0: #{tpu_custom_call.1}
  #allocation0 [shape = 'u32[]', space=smem, size = 0x4, offset = 0x4, fixed_abs, tag = 'smem constant byte address 0x4 - core index']
  #allocation1 [shape = 'u32[72,128]{1,0:T(1,128)}', space=vmem, size = 0x9000, scoped, tag = 'internal scratch']
  %s0 = inlined_call_operand.vmem [shape: f32[16,32], index: 0, kind: input, shape index: {}]
  %s1 = inlined_call_operand.hbm [shape: bf16[32,32], index: 1, kind: input, shape index: {}]
  %s2 = inlined_call_operand.vmem [shape: f32[1,32], index: 2, kind: input, shape index: {}]
  %s3 = inlined_call_operand.hbm [shape: bf16[32,32], index: 3, kind: input, shape index: {}]
  %s4 = inlined_call_operand.vmem [shape: f32[1,32], index: 4, kind: input, shape index: {}]
  %s5 = inlined_call_operand.vmem [shape: f32[1,32], index: 5, kind: input, shape index: {}]
  %s6 = inlined_call_operand.vmem [shape: f32[1,32], index: 6, kind: input, shape index: {}]
  %s7 = inlined_call_operand.vmem [shape: bf16[32,16], index: 7, kind: input, shape index: {}]
  %s8 = inlined_call_operand.vmem [shape: f32[1,16], index: 8, kind: input, shape index: {}]
  %s9 = inlined_call_operand.hbm [shape: f32[16,16], index: 9, kind: output, shape index: {0}]
  %s10 = inlined_call_operand.hbm [shape: f32[16,32], index: 10, kind: output, shape index: {1}]
  %11 = xla_tuple %s9, %s10
  %s12 = sld [smem:[#allocation0]]
  $region85: #{tpu_custom_call.1} parent=0
    _
  %s14 = ssub.s32 1, %s12
  %s15 = scalar_select 0, %s14, %s12
  $region1: #{tpu_custom_call.1} parent=0
    #allocation2 [shape = 'u8[8192]{0}', space=vmem, size = 0x2000, scoped, tag = 'input window, operand 1, single buffered']
    #allocation3 [shape = 's32[2]{0}', space=sflag, size = 0x8, scoped, tag = 'scoped memory for tpu_custom_call.1']
    #allocation4 [shape = 's32[2]{0}', space=sflag, size = 0x8, scoped, tag = 'scoped memory for tpu_custom_call.1']
    #allocation5 [shape = 'u8[8192]{0}', space=vmem, size = 0x2000, scoped, tag = 'input window, operand 3, single buffered']
    #allocation6 [shape = 's32[1]{0}', space=sflag, size = 0x4, scoped, tag = 'scoped memory for tpu_custom_call.1']
    #allocation7 [shape = 'u8[8192]{0}', space=vmem, size = 0x2000, scoped, tag = 'output window, operand 0']
    #allocation8 [shape = 'u8[8192]{0}', space=vmem, size = 0x2000, scoped, tag = 'output window, operand 1']
    #allocation9 [shape = 's32[2]{0}', space=sflag, size = 0x8, scoped, tag = 'scoped memory for tpu_custom_call.1']
    %16 = vsyncpa [#allocation3], 0
    %17 = vsyncpa [#allocation6], 0
    %18 = vsyncpa [#allocation4], 0
    %s19 = scalar_lea.sflag [#allocation4], 1
    %20 = vsyncpa %s19, 0
    %21 = vsyncpa [#allocation9], 0
    %s22 = scalar_lea.sflag [#allocation9], 1
    %23 = vsyncpa %s22, 0
    loop: start=0, step=1, limit=4
    $region2: #{tpu_custom_call.1} parent=1 // loop_pre_header
      _
    $region3: #{tpu_custom_call.1} parent=1 // loop_header
      %s25 = sphi 0, %s29
      %p26 = scmp.ge.s32.totalorder %s25, 4
      %s35 = sphi 0, %s37
      %s38 = sphi 0, %s35
      %s39 = sphi 0, %s38
      %s55 = sphi 0, %s39
      %s59 = sphi 0, %s59
      %s61 = sphi 0, %s59
      %s62 = sphi 0, %s61
      %s76 = sphi 0, %s62
      %s80 = sphi 0, %s80
      %s82 = sphi 0, %s80
      %s83 = sphi 0, %s82
      %s97 = sphi 0, %s83
      %s101 = sphi 0, %s101
      %s103 = sphi 0, %s101
      %s104 = sphi 0, %s103
      %s118 = sphi 0, %s104
      %s122 = sphi 0, %s122
      %s124 = sphi 0, %s122
      %s125 = sphi 0, %s124
      %s139 = sphi 0, %s125
      %s143 = sphi 0, %s143
      %s145 = sphi 0, %s143
      %s146 = sphi 0, %s145
      %s160 = sphi 0, %s146
      %s164 = sphi 0, %s164
      %s166 = sphi 0, %s164
      %s167 = sphi 0, %s166
      %s181 = sphi 0, %s167
      %s185 = sphi 0, %s185
      %s187 = sphi 0, %s185
      %s188 = sphi 0, %s187
      %s202 = sphi 0, %s188
      %s206 = sphi 0, %s206
      %s208 = sphi 0, %s206
      %s209 = sphi 0, %s208
      %s223 = sphi 0, %s209
      %s229 = sphi 0, %s231
      %s232 = sphi 0, %s229
      %s233 = sphi 0, %s232
      %s249 = sphi 0, %s233
      %s255 = sphi 0, %s257
      %s258 = sphi 0, %s255
      %s259 = sphi 0, %s258
      %s275 = sphi 0, %s259
    $region4: #{tpu_custom_call.1} parent=1 // loop_header_branch
      %28 = sbr.rel (%p26) target = $region8
    $region5: #{tpu_custom_call.1} parent=1 // loop_body
      %s30 = ssub.s32 %s25, 1
      %s31 = ssub.s32 %s25, 2
      %s32 = sadd.s32 %s25, 1
      %s33 = ssub.s32 %s25, %s32
      %p34 = scmp.eq.s32.totalorder %s33, 0
      %s36 = sadd.s32 %s35, 1
      %s37 = scalar_select %p34, %s35, %s36
      %p40 = pneg %p34
      %p41 = scmp.eq.s32.totalorder %s25, 1
      %p42 = por %p40, %p41
      %p43 = scmp.ne.s32.totalorder %s35, %s38
      %p44 = scmp.eq.s32.totalorder %s25, 0
      %p45 = por %p43, %p44
      %p46 = scmp.ne.s32.totalorder %s35, %s38
      %p47 = scmp.eq.s32.totalorder %s30, 1
      %p48 = por %p46, %p47
      %p49 = scmp.ne.s32.totalorder %s38, %s39
      %p50 = scmp.eq.s32.totalorder %s30, 0
      %p51 = por %p49, %p50
      %p52 = scmp.ne.s32.totalorder %s38, %s39
      %p53 = scmp.eq.s32.totalorder %s31, 1
      %p54 = por %p52, %p53
      %p56 = scmp.ne.s32.totalorder %s39, %s55
      %p57 = scmp.eq.s32.totalorder %s31, 0
      %p58 = por %p56, %p57
      %s60 = sadd.s32 %s59, 1
      %p63 = scmp.eq.s32.totalorder %s25, 1
      %p64 = scmp.ne.s32.totalorder %s59, %s61
      %p65 = scmp.eq.s32.totalorder %s25, 0
      %p66 = por %p64, %p65
      %p67 = scmp.ne.s32.totalorder %s59, %s61
      %p68 = scmp.eq.s32.totalorder %s30, 1
      %p69 = por %p67, %p68
      %p70 = scmp.ne.s32.totalorder %s61, %s62
      %p71 = scmp.eq.s32.totalorder %s30, 0
      %p72 = por %p70, %p71
      %p73 = scmp.ne.s32.totalorder %s61, %s62
      %p74 = scmp.eq.s32.totalorder %s31, 1
      %p75 = por %p73, %p74
      %p77 = scmp.ne.s32.totalorder %s62, %s76
      %p78 = scmp.eq.s32.totalorder %s31, 0
      %p79 = por %p77, %p78
      %s81 = sadd.s32 %s80, 1
      %p84 = scmp.eq.s32.totalorder %s25, 1
      %p85 = scmp.ne.s32.totalorder %s80, %s82
      %p86 = scmp.eq.s32.totalorder %s25, 0
      %p87 = por %p85, %p86
      %p88 = scmp.ne.s32.totalorder %s80, %s82
      %p89 = scmp.eq.s32.totalorder %s30, 1
      %p90 = por %p88, %p89
      %p91 = scmp.ne.s32.totalorder %s82, %s83
      %p92 = scmp.eq.s32.totalorder %s30, 0
      %p93 = por %p91, %p92
      %p94 = scmp.ne.s32.totalorder %s82, %s83
      %p95 = scmp.eq.s32.totalorder %s31, 1
      %p96 = por %p94, %p95
      %p98 = scmp.ne.s32.totalorder %s83, %s97
      %p99 = scmp.eq.s32.totalorder %s31, 0
      %p100 = por %p98, %p99
      %s102 = sadd.s32 %s101, 1
      %p105 = scmp.eq.s32.totalorder %s25, 1
      %p106 = scmp.ne.s32.totalorder %s101, %s103
      %p107 = scmp.eq.s32.totalorder %s25, 0
      %p108 = por %p106, %p107
      %p109 = scmp.ne.s32.totalorder %s101, %s103
      %p110 = scmp.eq.s32.totalorder %s30, 1
      %p111 = por %p109, %p110
      %p112 = scmp.ne.s32.totalorder %s103, %s104
      %p113 = scmp.eq.s32.totalorder %s30, 0
      %p114 = por %p112, %p113
      %p115 = scmp.ne.s32.totalorder %s103, %s104
      %p116 = scmp.eq.s32.totalorder %s31, 1
      %p117 = por %p115, %p116
      %p119 = scmp.ne.s32.totalorder %s104, %s118
      %p120 = scmp.eq.s32.totalorder %s31, 0
      %p121 = por %p119, %p120
      %s123 = sadd.s32 %s122, 1
      %p126 = scmp.eq.s32.totalorder %s25, 1
      %p127 = scmp.ne.s32.totalorder %s122, %s124
      %p128 = scmp.eq.s32.totalorder %s25, 0
      %p129 = por %p127, %p128
      %p130 = scmp.ne.s32.totalorder %s122, %s124
      %p131 = scmp.eq.s32.totalorder %s30, 1
      %p132 = por %p130, %p131
      %p133 = scmp.ne.s32.totalorder %s124, %s125
      %p134 = scmp.eq.s32.totalorder %s30, 0
      %p135 = por %p133, %p134
      %p136 = scmp.ne.s32.totalorder %s124, %s125
      %p137 = scmp.eq.s32.totalorder %s31, 1
      %p138 = por %p136, %p137
      %p140 = scmp.ne.s32.totalorder %s125, %s139
      %p141 = scmp.eq.s32.totalorder %s31, 0
      %p142 = por %p140, %p141
      %s144 = sadd.s32 %s143, 1
      %p147 = scmp.eq.s32.totalorder %s25, 1
      %p148 = scmp.ne.s32.totalorder %s143, %s145
      %p149 = scmp.eq.s32.totalorder %s25, 0
      %p150 = por %p148, %p149
      %p151 = scmp.ne.s32.totalorder %s143, %s145
      %p152 = scmp.eq.s32.totalorder %s30, 1
      %p153 = por %p151, %p152
      %p154 = scmp.ne.s32.totalorder %s145, %s146
      %p155 = scmp.eq.s32.totalorder %s30, 0
      %p156 = por %p154, %p155
      %p157 = scmp.ne.s32.totalorder %s145, %s146
      %p158 = scmp.eq.s32.totalorder %s31, 1
      %p159 = por %p157, %p158
      %p161 = scmp.ne.s32.totalorder %s146, %s160
      %p162 = scmp.eq.s32.totalorder %s31, 0
      %p163 = por %p161, %p162
      %s165 = sadd.s32 %s164, 1
      %p168 = scmp.eq.s32.totalorder %s25, 1
      %p169 = scmp.ne.s32.totalorder %s164, %s166
      %p170 = scmp.eq.s32.totalorder %s25, 0
      %p171 = por %p169, %p170
      %p172 = scmp.ne.s32.totalorder %s164, %s166
      %p173 = scmp.eq.s32.totalorder %s30, 1
      %p174 = por %p172, %p173
      %p175 = scmp.ne.s32.totalorder %s166, %s167
      %p176 = scmp.eq.s32.totalorder %s30, 0
      %p177 = por %p175, %p176
      %p178 = scmp.ne.s32.totalorder %s166, %s167
      %p179 = scmp.eq.s32.totalorder %s31, 1
      %p180 = por %p178, %p179
      %p182 = scmp.ne.s32.totalorder %s167, %s181
      %p183 = scmp.eq.s32.totalorder %s31, 0
      %p184 = por %p182, %p183
      %s186 = sadd.s32 %s185, 1
      %p189 = scmp.eq.s32.totalorder %s25, 1
      %p190 = scmp.ne.s32.totalorder %s185, %s187
      %p191 = scmp.eq.s32.totalorder %s25, 0
      %p192 = por %p190, %p191
      %p193 = scmp.ne.s32.totalorder %s185, %s187
      %p194 = scmp.eq.s32.totalorder %s30, 1
      %p195 = por %p193, %p194
      %p196 = scmp.ne.s32.totalorder %s187, %s188
      %p197 = scmp.eq.s32.totalorder %s30, 0
      %p198 = por %p196, %p197
      %p199 = scmp.ne.s32.totalorder %s187, %s188
      %p200 = scmp.eq.s32.totalorder %s31, 1
      %p201 = por %p199, %p200
      %p203 = scmp.ne.s32.totalorder %s188, %s202
      %p204 = scmp.eq.s32.totalorder %s31, 0
      %p205 = por %p203, %p204
      %s207 = sadd.s32 %s206, 1
      %p210 = scmp.eq.s32.totalorder %s25, 1
      %p211 = scmp.ne.s32.totalorder %s206, %s208
      %p212 = scmp.eq.s32.totalorder %s25, 0
      %p213 = por %p211, %p212
      %p214 = scmp.ne.s32.totalorder %s206, %s208
      %p215 = scmp.eq.s32.totalorder %s30, 1
      %p216 = por %p214, %p215
      %p217 = scmp.ne.s32.totalorder %s208, %s209
      %p218 = scmp.eq.s32.totalorder %s30, 0
      %p219 = por %p217, %p218
      %p220 = scmp.ne.s32.totalorder %s208, %s209
      %p221 = scmp.eq.s32.totalorder %s31, 1
      %p222 = por %p220, %p221
      %p224 = scmp.ne.s32.totalorder %s209, %s223
      %p225 = scmp.eq.s32.totalorder %s31, 0
      %p226 = por %p224, %p225
      %s227 = ssub.s32 %s25, %s32
      %p228 = scmp.eq.s32.totalorder %s227, 0
      %s230 = sadd.s32 %s229, 1
      %s231 = scalar_select %p228, %s229, %s230
      %p234 = pneg %p228
      %p235 = scmp.eq.s32.totalorder %s25, 1
      %p236 = por %p234, %p235
      %p237 = scmp.ne.s32.totalorder %s229, %s232
      %p238 = scmp.eq.s32.totalorder %s25, 0
      %p239 = por %p237, %p238
      %p240 = scmp.ne.s32.totalorder %s229, %s232
      %p241 = scmp.eq.s32.totalorder %s30, 1
      %p242 = por %p240, %p241
      %p243 = scmp.ne.s32.totalorder %s232, %s233
      %p244 = scmp.eq.s32.totalorder %s30, 0
      %p245 = por %p243, %p244
      %p246 = scmp.ne.s32.totalorder %s232, %s233
      %p247 = scmp.eq.s32.totalorder %s31, 1
      %p248 = por %p246, %p247
      %p250 = scmp.ne.s32.totalorder %s233, %s249
      %p251 = scmp.eq.s32.totalorder %s31, 0
      %p252 = por %p250, %p251
      %s253 = ssub.s32 %s25, %s32
      %p254 = scmp.eq.s32.totalorder %s253, 0
      %s256 = sadd.s32 %s255, 1
      %s257 = scalar_select %p254, %s255, %s256
      %p260 = pneg %p254
      %p261 = scmp.eq.s32.totalorder %s25, 1
      %p262 = por %p260, %p261
      %p263 = scmp.ne.s32.totalorder %s255, %s258
      %p264 = scmp.eq.s32.totalorder %s25, 0
      %p265 = por %p263, %p264
      %p266 = scmp.ne.s32.totalorder %s255, %s258
      %p267 = scmp.eq.s32.totalorder %s30, 1
      %p268 = por %p266, %p267
      %p269 = scmp.ne.s32.totalorder %s258, %s259
      %p270 = scmp.eq.s32.totalorder %s30, 0
      %p271 = por %p269, %p270
      %p272 = scmp.ne.s32.totalorder %s258, %s259
      %p273 = scmp.eq.s32.totalorder %s31, 1
      %p274 = por %p272, %p273
      %p276 = scmp.ne.s32.totalorder %s259, %s275
      %p277 = scmp.eq.s32.totalorder %s31, 0
      %p278 = por %p276, %p277
      %p279 = scmp.le.s32.totalorder 1, %s25
      %p280 = scmp.lt.s32.totalorder %s25, 3
      %p281 = pnand %p279, %p280
      %p282 = pneg %p281
      // Predicated region
      $region9: #{tpu_custom_call.1} parent=5 // pred_check
        _
      $region10: #{tpu_custom_call.1} parent=5 // pred_check_branch
        %284 = sbr.rel (%p281) target = $region12
      $region11: #{tpu_custom_call.1} parent=5 // pred_region
        %s285 = ssub.s32 %s25, 1
        // Predicated region
        $region13: #{tpu_custom_call.1} parent=11 // pred_check
          %p286 = pneg %p72
        $region14: #{tpu_custom_call.1} parent=11 // pred_check_branch
          %288 = sbr.rel (%p286) target = $region16
        $region15: #{tpu_custom_call.1} parent=11 // pred_region
          %290 = vsyncadd [#allocation3], 0
          %s291 = sshll.u32 %s1, 4
          %s292 = int_to_ptr.hbm [resolvable:$true] %s291
          %s293 = sshll.u32 [#allocation2], 4
          %s294 = int_to_ptr.vmem [resolvable:$true] %s293
          %299 = dma.hbm_to_vmem [thread:$0]  %s292, 256, %s294, [#allocation3], 64, 64, 4
        $region16: #{tpu_custom_call.1} parent=11 // pred_fallthru
          _
        // Predicated region
        $region17: #{tpu_custom_call.1} parent=11 // pred_check
          %p300 = pneg %p93
        $region18: #{tpu_custom_call.1} parent=11 // pred_check_branch
          %302 = sbr.rel (%p300) target = $region20
        $region19: #{tpu_custom_call.1} parent=11 // pred_region
          _
        $region20: #{tpu_custom_call.1} parent=11 // pred_fallthru
          _
        // Predicated region
        $region21: #{tpu_custom_call.1} parent=11 // pred_check
          %p303 = pneg %p114
        $region22: #{tpu_custom_call.1} parent=11 // pred_check_branch
          %305 = sbr.rel (%p303) target = $region24
        $region23: #{tpu_custom_call.1} parent=11 // pred_region
          %307 = vsyncadd [#allocation6], 0
          %s308 = sshll.u32 %s3, 4
          %s309 = int_to_ptr.hbm [resolvable:$true] %s308
          %s310 = sshll.u32 [#allocation5], 4
          %s311 = int_to_ptr.vmem [resolvable:$true] %s310
          %316 = dma.hbm_to_vmem [thread:$0]  %s309, 256, %s311, [#allocation6], 64, 64, 4
        $region24: #{tpu_custom_call.1} parent=11 // pred_fallthru
          _
        // Predicated region
        $region25: #{tpu_custom_call.1} parent=11 // pred_check
          %p317 = pneg %p135
        $region26: #{tpu_custom_call.1} parent=11 // pred_check_branch
          %319 = sbr.rel (%p317) target = $region28
        $region27: #{tpu_custom_call.1} parent=11 // pred_region
          _
        $region28: #{tpu_custom_call.1} parent=11 // pred_fallthru
          _
        // Predicated region
        $region29: #{tpu_custom_call.1} parent=11 // pred_check
          %p320 = pneg %p156
        $region30: #{tpu_custom_call.1} parent=11 // pred_check_branch
          %322 = sbr.rel (%p320) target = $region32
        $region31: #{tpu_custom_call.1} parent=11 // pred_region
          _
        $region32: #{tpu_custom_call.1} parent=11 // pred_fallthru
          _
        // Predicated region
        $region33: #{tpu_custom_call.1} parent=11 // pred_check
          %p323 = pneg %p177
        $region34: #{tpu_custom_call.1} parent=11 // pred_check_branch
          %325 = sbr.rel (%p323) target = $region36
        $region35: #{tpu_custom_call.1} parent=11 // pred_region
          _
        $region36: #{tpu_custom_call.1} parent=11 // pred_fallthru
          _
        // Predicated region
        $region37: #{tpu_custom_call.1} parent=11 // pred_check
          %p326 = pneg %p198
        $region38: #{tpu_custom_call.1} parent=11 // pred_check_branch
          %328 = sbr.rel (%p326) target = $region40
        $region39: #{tpu_custom_call.1} parent=11 // pred_region
          _
        $region40: #{tpu_custom_call.1} parent=11 // pred_fallthru
          _
        // Predicated region
        $region41: #{tpu_custom_call.1} parent=11 // pred_check
          %p329 = pneg %p219
        $region42: #{tpu_custom_call.1} parent=11 // pred_check_branch
          %331 = sbr.rel (%p329) target = $region44
        $region43: #{tpu_custom_call.1} parent=11 // pred_region
          _
        $region44: #{tpu_custom_call.1} parent=11 // pred_fallthru
          _
      $region12: #{tpu_custom_call.1} parent=5 // pred_fallthru
        _
      %p332 = scmp.lt.s32.totalorder %s25, 2
      // Predicated region
      $region45: #{tpu_custom_call.1} parent=5 // pred_check
        %p333 = pneg %p332
      $region46: #{tpu_custom_call.1} parent=5 // pred_check_branch
        %335 = sbr.rel (%p333) target = $region48
      $region47: #{tpu_custom_call.1} parent=5 // pred_region
        // Predicated region
        $region49: #{tpu_custom_call.1} parent=47 // pred_check
          %p336 = pneg %p45
        $region50: #{tpu_custom_call.1} parent=47 // pred_check_branch
          %338 = sbr.rel (%p336) target = $region52
        $region51: #{tpu_custom_call.1} parent=47 // pred_region
          %p339 = scmp.lt.s32.totalorder %s25, 1
          %s340 = scalar_select %p339, %s25, 1
          %s341 = smul.addr %s340, 8
          %s342 = scalar_lea.vmem %s0, %s341
        $region52: #{tpu_custom_call.1} parent=47 // pred_fallthru
          _
      $region48: #{tpu_custom_call.1} parent=5 // pred_fallthru
        _
      %p343 = scmp.le.s32.totalorder 1, %s25
      %p344 = scmp.lt.s32.totalorder %s25, 3
      %p345 = pnand %p343, %p344
      %p346 = pneg %p345
      // Predicated region
      $region53: #{tpu_custom_call.1} parent=5 // pred_check
        _
      $region54: #{tpu_custom_call.1} parent=5 // pred_check_branch
        %348 = sbr.rel (%p345) target = $region56
      $region55: #{tpu_custom_call.1} parent=5 // pred_region
        %s349 = ssub.s32 %s25, 1
        // Predicated region
        $region57: #{tpu_custom_call.1} parent=55 // pred_check
          %p350 = pneg %p72
        $region58: #{tpu_custom_call.1} parent=55 // pred_check_branch
          %352 = sbr.rel (%p350) target = $region60
        $region59: #{tpu_custom_call.1} parent=55 // pred_region
          %354 = dma.done [#allocation3], 256
        $region60: #{tpu_custom_call.1} parent=55 // pred_fallthru
          _
        // Predicated region
        $region61: #{tpu_custom_call.1} parent=55 // pred_check
          %p355 = pneg %p114
        $region62: #{tpu_custom_call.1} parent=55 // pred_check_branch
          %357 = sbr.rel (%p355) target = $region64
        $region63: #{tpu_custom_call.1} parent=55 // pred_region
          %359 = dma.done [#allocation6], 256
        $region64: #{tpu_custom_call.1} parent=55 // pred_fallthru
          _
        %p360 = scmp.lt.s32.totalorder %s30, 1
        %s361 = scalar_select %p360, %s30, 1
        %s362 = smul.addr %s361, 8
        %s363 = scalar_lea.vmem %s0, %s362
        %p364 = pneg %p51
        %p365 = pneg %p48
        %p366 = pneg %p72
        %p367 = pneg %p69
        %p368 = pneg %p93
        %p369 = pneg %p90
        %p370 = pneg %p114
        %p371 = pneg %p111
        %p372 = pneg %p135
        %p373 = pneg %p132
        %p374 = pneg %p156
        %p375 = pneg %p153
        %p376 = pneg %p177
        %p377 = pneg %p174
        %p378 = pneg %p198
        %p379 = pneg %p195
        %p380 = pneg %p219
        %p381 = pneg %p216
        %p382 = pneg %p245
        %p383 = pneg %p242
        %s384 = sand.u32 %s232, 1
        %s385 = scalar_lea.sflag [#allocation4], %s384
        %s386 = sand.u32 %s232, 1
        %s387 = smul.addr %s386, 8
        %s388 = scalar_lea.vmem [#allocation7], %s387
        %p389 = pneg %p271
        %p390 = pneg %p268
        %s391 = sand.u32 %s258, 1
        %s392 = scalar_lea.sflag [#allocation9], %s391
        %s393 = sand.u32 %s258, 1
        %s394 = smul.addr %s393, 8
        %s395 = scalar_lea.vmem [#allocation8], %s394
        %p396 = scmp.lt.s32.totalorder %s30, 1
        %s397 = scalar_select %p396, %s30, 1
        %s398 = smul.addr %s397, 8
        %s399 = scalar_lea.vmem %s0, %s398
        %v401 = vld [vmem:[%s2] sm:$0x1]
        %v402 = vld [vmem:[%s4] sm:$0x1]
        %v403 = vld [vmem:[%s5] sm:$0x1]
        %v404 = vld [vmem:[%s6] sm:$0x1]
        %v405 = vld [vmem:[%s8] sm:$0x1]
        %v406 = vld [vmem:[%s399] sm:$0xff]
        %v407 = vpack.c.bf16 %v406, %v406
        %v408 = vld [vmem:[#allocation2] sm:$0xf]
        %v409 = vld [vmem:[#allocation2 + $0x4] sm:$0xf]
        %v410 = vld [vmem:[#allocation2 + $0x8] sm:$0xf]
        %v411 = vld [vmem:[#allocation2 + $0xc] sm:$0xf]
        %v413 = vperm.slane %v401, 0
        %v419 = vunpack.c.l.b16 %v408
        %v420 = vunpack.c.l.b16 %v409
        %v421 = vunpack.c.l.b16 %v410
        %v422 = vunpack.c.l.b16 %v411
        %v423 = vpack.c.b16 %v420, %v419
        %v424 = vpack.c.b16 %v422, %v421
        %vm427 = vcmask 261120
        %v429 = vsel %vm427, %v407, 0
        %431 = vmatpush.bf16.msra.mxu0 0
        %432 = vmatpush.bf16.msra.mxu0 0
        %433 = vmatpush.bf16.msra.mxu0 0
        %434 = vmatpush.bf16.msra.mxu0 0
        %435 = vmatpush.bf16.msra.mxu0 0
        %436 = vmatpush.bf16.msra.mxu0 0
        %437 = vmatpush.bf16.msra.mxu0 %v424
        %438 = vmatpush.bf16.msra.mxu0 %v423
        %439 = vmatmul.bf16.gmra.mxu0 %v429
        %v440 = vpop.f32.mrf.mxu0
        %v441 = vadd.f32 %v413, %v440
        %v442 = vpop.f32.mrf.mxu0
        %443 = vdwg.mxu0
        %v444 = vmax.f32 %v441, 0.0
        %v445 = vpack.c.bf16 %v444, %v444
        %v446 = vld [vmem:[#allocation5] sm:$0xf]
        %v447 = vld [vmem:[#allocation5 + $0x4] sm:$0xf]
        %v448 = vld [vmem:[#allocation5 + $0x8] sm:$0xf]
        %v449 = vld [vmem:[#allocation5 + $0xc] sm:$0xf]
        %v451 = vperm.slane %v402, 0
        %v457 = vunpack.c.l.b16 %v446
        %v458 = vunpack.c.l.b16 %v447
        %v459 = vunpack.c.l.b16 %v448
        %v460 = vunpack.c.l.b16 %v449
        %v461 = vpack.c.b16 %v458, %v457
        %v462 = vpack.c.b16 %v460, %v459
        %v466 = vsel %vm427, %v445, 0
        %468 = vmatpush.bf16.msra.mxu0 0
        %469 = vmatpush.bf16.msra.mxu0 0
        %470 = vmatpush.bf16.msra.mxu0 0
        %471 = vmatpush.bf16.msra.mxu0 0
        %472 = vmatpush.bf16.msra.mxu0 0
        %473 = vmatpush.bf16.msra.mxu0 0
        %474 = vmatpush.bf16.msra.mxu0 %v462
        %475 = vmatpush.bf16.msra.mxu0 %v461
        %476 = vmatmul.bf16.gmra.mxu0 %v466
        %v477 = vpop.f32.mrf.mxu0
        %v478 = vadd.f32 %v451, %v477
        %v479 = vpop.f32.mrf.mxu0
        %480 = vdwg.mxu0
        %v481 = vmax.f32 %v478, 0.0
        %v482 = vsel %vm427, %v481, 0.0
        %483 = vadd.xlane.f32.xlu0 %v482
        %v484 = vpop.xlane.xlu0 %483
        %v485 = vmul.f32 %v484, 0.03125
        %v486 = vsub.f32 %v481, %v485
        %v487 = vmul.f32 %v486, %v486
        %v488 = vsel %vm427, %v487, 0.0
        %489 = vadd.xlane.f32.xlu0 %v488
        %v490 = vpop.xlane.xlu0 %489
        %v491 = vmul.f32 %v490, 0.03125
        %v492 = vadd.f32 %v491, 1e-05
        %v493 = vrsqrt.pop %v492
        %v494 = vmul.f32 %v493, %v492
        %v495 = vmul.f32 %v494, %v493
        %v496 = vmul.f32 0.5, %v495
        %v497 = vsub.f32 1.5, %v496
        %v498 = vmul.f32 %v493, %v497
        %vm499 = vweird.f32 %v492
        %vm500 = vweird.f32 %v493
        %vm501 = vmor %vm499, %vm500
        %v502 = vsel %vm501, %v493, %v498
        %v503 = vmul.f32 %v486, %v502
        %v505 = vperm.slane %v403, 0
        %v507 = vmul.f32 %v503, %v505
        %v509 = vperm.slane %v404, 0
        %v511 = vadd.f32 %v507, %v509
        %512 = vst.msk [vmem:[%s395] sm:$0xff] %vm427, %v511
        %v513 = vpack.c.bf16 %v511, %v511
        %v514 = vld [vmem:[%s7] sm:$0xf]
        %v515 = vld [vmem:[%s7 + $0x4] sm:$0xf]
        %v516 = vld [vmem:[%s7 + $0x8] sm:$0xf]
        %v517 = vld [vmem:[%s7 + $0xc] sm:$0xf]
        %v519 = vperm.slane %v405, 0
        %v525 = vunpack.c.l.b16 %v514
        %v526 = vunpack.c.l.b16 %v515
        %v527 = vunpack.c.l.b16 %v516
        %v528 = vunpack.c.l.b16 %v517
        %v529 = vpack.c.b16 %v526, %v525
        %v530 = vpack.c.b16 %v528, %v527
        %v534 = vsel %vm427, %v513, 0
        %536 = vmatpush.bf16.msra.mxu0 0
        %537 = vmatpush.bf16.msra.mxu0 0
        %538 = vmatpush.bf16.msra.mxu0 0
        %539 = vmatpush.bf16.msra.mxu0 0
        %540 = vmatpush.bf16.msra.mxu0 0
        %541 = vmatpush.bf16.msra.mxu0 0
        %542 = vmatpush.bf16.msra.mxu0 %v530
        %543 = vmatpush.bf16.msra.mxu0 %v529
        %544 = vmatmul.bf16.gmra.mxu0 %v534
        %v545 = vpop.f32.mrf.mxu0
        %v546 = vadd.f32 %v519, %v545
        %v547 = vpop.f32.mrf.mxu0
        %548 = vdwg.mxu0
        %vm549 = vcmask 130048
        %550 = vst.msk [vmem:[%s388] sm:$0xff] %vm549, %v546
        %s551 = sand.u32 %s232, 1
        %s552 = scalar_lea.sflag [#allocation4], %s551
        %s553 = sand.u32 %s232, 1
        %s554 = smul.addr %s553, 8
        %s555 = scalar_lea.vmem [#allocation7], %s554
        %s556 = sand.u32 %s258, 1
        %s557 = scalar_lea.sflag [#allocation9], %s556
        %s558 = sand.u32 %s258, 1
        %s559 = smul.addr %s558, 8
        %s560 = scalar_lea.vmem [#allocation8], %s559
        // Predicated region
        $region65: #{tpu_custom_call.1} parent=55 // pred_check
          %p561 = pneg %p242
        $region66: #{tpu_custom_call.1} parent=55 // pred_check_branch
          %563 = sbr.rel (%p561) target = $region68
        $region67: #{tpu_custom_call.1} parent=55 // pred_region
          %565 = vsyncadd %s552, 0
          %s566 = smul.addr %s30, 8
          %s567 = scalar_lea.hbm %s9, %s566
          %s569 = sshll.u32 %s555, 4
          %s570 = int_to_ptr.vmem [resolvable:$true] %s569
          %s571 = sshll.u32 %s567, 4
          %s572 = int_to_ptr.hbm [resolvable:$true] %s571
          %574 = dma.vmem_to_hbm [thread:$0]  %s570, 128, %s572, %s552
        $region68: #{tpu_custom_call.1} parent=55 // pred_fallthru
          _
        // Predicated region
        $region69: #{tpu_custom_call.1} parent=55 // pred_check
          %p575 = pneg %p268
        $region70: #{tpu_custom_call.1} parent=55 // pred_check_branch
          %577 = sbr.rel (%p575) target = $region72
        $region71: #{tpu_custom_call.1} parent=55 // pred_region
          %579 = vsyncadd %s557, 0
          %s580 = smul.addr %s30, 8
          %s581 = scalar_lea.hbm %s10, %s580
          %s583 = sshll.u32 %s560, 4
          %s584 = int_to_ptr.vmem [resolvable:$true] %s583
          %s585 = sshll.u32 %s581, 4
          %s586 = int_to_ptr.hbm [resolvable:$true] %s585
          %588 = dma.vmem_to_hbm [thread:$0]  %s584, 128, %s586, %s557
        $region72: #{tpu_custom_call.1} parent=55 // pred_fallthru
          _
      $region56: #{tpu_custom_call.1} parent=5 // pred_fallthru
        _
      %p589 = scmp.le.s32.totalorder 2, %s25
      // Predicated region
      $region73: #{tpu_custom_call.1} parent=5 // pred_check
        %p590 = pneg %p589
      $region74: #{tpu_custom_call.1} parent=5 // pred_check_branch
        %592 = sbr.rel (%p590) target = $region76
      $region75: #{tpu_custom_call.1} parent=5 // pred_region
        %s593 = ssub.s32 %s25, 2
        // Predicated region
        $region77: #{tpu_custom_call.1} parent=75 // pred_check
          %p594 = pneg %p248
        $region78: #{tpu_custom_call.1} parent=75 // pred_check_branch
          %596 = sbr.rel (%p594) target = $region80
        $region79: #{tpu_custom_call.1} parent=75 // pred_region
          %s597 = sand.u32 %s233, 1
          %s598 = scalar_lea.sflag [#allocation4], %s597
          %s599 = sand.u32 %s233, 1
          %s600 = smul.addr %s599, 8
          %s601 = scalar_lea.vmem [#allocation7], %s600
          %603 = dma.done %s598, 128
        $region80: #{tpu_custom_call.1} parent=75 // pred_fallthru
          _
        // Predicated region
        $region81: #{tpu_custom_call.1} parent=75 // pred_check
          %p604 = pneg %p274
        $region82: #{tpu_custom_call.1} parent=75 // pred_check_branch
          %606 = sbr.rel (%p604) target = $region84
        $region83: #{tpu_custom_call.1} parent=75 // pred_region
          %s607 = sand.u32 %s259, 1
          %s608 = scalar_lea.sflag [#allocation9], %s607
          %s609 = sand.u32 %s259, 1
          %s610 = smul.addr %s609, 8
          %s611 = scalar_lea.vmem [#allocation8], %s610
          %613 = dma.done %s608, 128
        $region84: #{tpu_custom_call.1} parent=75 // pred_fallthru
          _
      $region76: #{tpu_custom_call.1} parent=5 // pred_fallthru
        _
    $region6: #{tpu_custom_call.1} parent=1 // loop_footer
      %s29 = sadd.s32 1, %s25
    $region7: #{tpu_custom_call.1} parent=1 // loop_footer_branch
      %24 = sbr.rel target = $region3
    $region8: #{tpu_custom_call.1} parent=1 // loop_exit
      _
    %614 = vsyncpa [#allocation3], 1
    %s615 = scalar_lea.sflag [#allocation3], 1
    %616 = vsyncpa %s615, 1
    %617 = vsyncpa [#allocation6], 1
    %618 = vsyncpa [#allocation4], 1
    %s619 = scalar_lea.sflag [#allocation4], 1
    %620 = vsyncpa %s619, 1
    %621 = vsyncpa [#allocation9], 1
    %s622 = scalar_lea.sflag [#allocation9], 1
    %623 = vsyncpa %s622, 1

</llo_original>
